<compile_context>
chip_gen: v6e
topology: v6e:2x2x1
jax: 0.10.0
libtpu: 0.0.40
codegen_flags: <defaults>
</compile_context>

<pallas_src>
import jax
import jax.numpy as jnp
from jax.experimental import pallas as pl
from jax.experimental.pallas import tpu as pltpu


# ----------------------------------------------------------------------------
# Fused kernel: num_layers stacked LSTM layers + fc1/ReLU/fc2 head.
# ----------------------------------------------------------------------------
def _make_fused_kernel(T, B, BP, I, H, num_layers):
    def kernel(*refs):
        # refs layout:
        #   x2d (T*BP, I) bf16,
        #   per layer: block (in_l + H + 1, 4H) f32 = [Wih^T; Whh^T; bias],
        #   head (H + 3, 128) f32 = [fc1_w^T; fc1_b; fc2_w; fc2_b],
        #   out (B, 1) f32
        x_ref = refs[0]
        layer_refs = refs[1:1 + num_layers]
        head_ref = refs[1 + num_layers]
        out_ref = refs[2 + num_layers]

        layer_in = x_ref[...]                                  # (T*BP, in_0) bf16
        h = None
        for l in range(num_layers):
            in_l = I if l == 0 else H
            blk = layer_refs[l][...]                           # f32
            wih = blk[0:in_l, :].astype(jnp.bfloat16)          # (in_l, 4H)
            whh = blk[in_l:in_l + H, :].astype(jnp.bfloat16)   # (H, 4H)
            bias = blk[in_l + H:in_l + H + 1, :]               # (1, 4H) f32

            # Hoisted input projection for ALL T steps of this layer:
            # one MXU matmul off the serial recurrence path.
            gx = jnp.dot(layer_in, wih,
                         preferred_element_type=jnp.float32) + bias  # (T*BP, 4H)

            h = jnp.zeros((BP, H), jnp.float32)
            c = jnp.zeros((BP, H), jnp.float32)
            outs = []
            # T is a tiny compile-time constant: fully unrolled.
            for t in range(T):
                # BP is a multiple of 8 -> this slab is sublane-aligned.
                gates = gx[t * BP:(t + 1) * BP, :] + jnp.dot(
                    h.astype(jnp.bfloat16), whh,
                    preferred_element_type=jnp.float32)        # (BP, 4H) f32
                # PyTorch gate order i, f, g, o: one sigmoid + one tanh pass
                # over the full (BP, 4H) vreg, then static lane slices.
                sig = jax.nn.sigmoid(gates)
                tah = jnp.tanh(gates)
                i_g = sig[:, 0 * H:1 * H]
                f_g = sig[:, 1 * H:2 * H]
                g_g = tah[:, 2 * H:3 * H]
                o_g = sig[:, 3 * H:4 * H]
                c = f_g * c + i_g * g_g
                h = o_g * jnp.tanh(c)
                if l + 1 < num_layers:
                    outs.append(h)
            if l + 1 < num_layers:
                # Next layer's input: whole-vreg stacking (aligned pieces),
                # cast once to bf16 for its hoisted projection.
                layer_in = jnp.concatenate(outs, axis=0).astype(jnp.bfloat16)

        # ---- head: relu(h_last @ W1^T + b1), then fc2 as VPU mul + lane sum.
        # TODO(synk): nn.Dropout is identity in inference; stochastic
        # train-mode dropout not emitted.
        head = head_ref[...]
        fc1_w = head[0:H, :]                                   # (H, 128) zero-padded
        fc1_b = head[H:H + 1, :]                               # (1, 128)
        fc2_w = head[H + 1:H + 2, :]                           # (1, 128) zero-padded
        fc2_b = head[H + 2:H + 3, 0:1]                         # (1, 1)
        z = jnp.maximum(jnp.dot(h, fc1_w,
                                preferred_element_type=jnp.float32) + fc1_b,
                        0.0)                                   # (BP, 128)
        y = jnp.sum(z * fc2_w, axis=-1, keepdims=True) + fc2_b  # (BP, 1)
        out_ref[...] = y[0:B, :]

    return kernel


# ----------------------------------------------------------------------------
# One-time parameter packing (outside the per-call jit).
# ----------------------------------------------------------------------------
def prepare_params(params):
    """Pack per-layer [Wih^T; Whh^T; bias] blocks and a lane-dense head block."""
    blocks = []
    for lp in params["lstm"]:
        wih_t = jnp.transpose(lp["w_ih"]).astype(jnp.float32)   # (in, 4H)
        whh_t = jnp.transpose(lp["w_hh"]).astype(jnp.float32)   # (H, 4H)
        bias = (lp["b_ih"] + lp["b_hh"]).reshape(1, -1).astype(jnp.float32)
        blocks.append(jnp.concatenate([wih_t, whh_t, bias], axis=0))

    H = params["lstm"][0]["w_hh"].shape[1]
    F1 = params["fc1_w"].shape[0]                               # 64
    head = jnp.zeros((H + 3, 128), jnp.float32)
    head = head.at[0:H, 0:F1].set(jnp.transpose(params["fc1_w"]))
    head = head.at[H, 0:F1].set(params["fc1_b"])
    head = head.at[H + 1, 0:F1].set(params["fc2_w"][0])
    head = head.at[H + 2, 0].set(params["fc2_b"][0])
    return tuple(blocks), head


@jax.jit
def bitcoin_lstm_forward(x_bti, lstm_blocks, head_block):
    """x_bti: (B, T, input_size) batch-first float32. Returns (B, 1) float32."""
    B, T, I = x_bti.shape
    num_layers = len(lstm_blocks)
    H = head_block.shape[0] - 3
    BP = ((B + 7) // 8) * 8                                     # pad batch to sublane group

    # Time-major, batch padded to BP, flattened, cast to bf16 for the MXU.
    x_tm = jnp.transpose(x_bti, (1, 0, 2))                      # (T, B, I)
    x_tm = jnp.pad(x_tm, ((0, 0), (0, BP - B), (0, 0)))
    x2d = x_tm.reshape(T * BP, I).astype(jnp.bfloat16)

    kernel = _make_fused_kernel(T, B, BP, I, H, num_layers)
    n_in = 1 + num_layers + 1
    return pl.pallas_call(
        kernel,
        out_shape=jax.ShapeDtypeStruct((B, 1), jnp.float32),
        in_specs=[pl.BlockSpec(memory_space=pltpu.MemorySpace.VMEM)] * n_in,
        out_specs=pl.BlockSpec(memory_space=pltpu.MemorySpace.VMEM),
    )(x2d, *lstm_blocks, head_block)


# ----------------------------------------------------------------------------
# Params + pure-JAX reference (for correctness check)
# ----------------------------------------------------------------------------
def init_params(key, input_size, hidden_size=32, num_layers=2):
    """Deterministic uniform(-k, k) init like PyTorch, k = 1/sqrt(hidden)."""
    params = {"lstm": []}
    k = 1.0 / jnp.sqrt(hidden_size)
    for layer in range(num_layers):
        in_sz = input_size if layer == 0 else hidden_size
        key, k1, k2, k3, k4 = jax.random.split(key, 5)
        params["lstm"].append({
            "w_ih": jax.random.uniform(k1, (4 * hidden_size, in_sz), jnp.float32, -k, k),
            "w_hh": jax.random.uniform(k2, (4 * hidden_size, hidden_size), jnp.float32, -k, k),
            "b_ih": jax.random.uniform(k3, (4 * hidden_size,), jnp.float32, -k, k),
            "b_hh": jax.random.uniform(k4, (4 * hidden_size,), jnp.float32, -k, k),
        })
    key, k1, k2, k3, k4 = jax.random.split(key, 5)
    kf1 = 1.0 / jnp.sqrt(hidden_size)
    kf2 = 1.0 / jnp.sqrt(64)
    params["fc1_w"] = jax.random.uniform(k1, (64, hidden_size), jnp.float32, -kf1, kf1)
    params["fc1_b"] = jax.random.uniform(k2, (64,), jnp.float32, -kf1, kf1)
    params["fc2_w"] = jax.random.uniform(k3, (1, 64), jnp.float32, -kf2, kf2)
    params["fc2_b"] = jax.random.uniform(k4, (1,), jnp.float32, -kf2, kf2)
    return params


def _reference_forward(x_bti, params):
    """Plain-JAX reference matching nn.LSTM(batch_first=True) inference."""
    x = jnp.transpose(x_bti, (1, 0, 2)).astype(jnp.float32)     # (T, B, I)
    T, B, _ = x.shape
    H = params["lstm"][0]["w_hh"].shape[1]
    for lp in params["lstm"]:
        wih, whh = lp["w_ih"], lp["w_hh"]
        b = lp["b_ih"] + lp["b_hh"]
        h = jnp.zeros((B, H), jnp.float32)
        c = jnp.zeros((B, H), jnp.float32)
        outs = []
        for t in range(T):
            g = x[t] @ wih.T + h @ whh.T + b
            i = jax.nn.sigmoid(g[:, 0 * H:1 * H])
            f = jax.nn.sigmoid(g[:, 1 * H:2 * H])
            gg = jnp.tanh(g[:, 2 * H:3 * H])
            o = jax.nn.sigmoid(g[:, 3 * H:4 * H])
            c = f * c + i * gg
            h = o * jnp.tanh(c)
            outs.append(h)
        x = jnp.stack(outs, axis=0)
    h_last = x[-1]
    z = jnp.maximum(h_last @ params["fc1_w"].T + params["fc1_b"], 0.0)
    return z @ params["fc2_w"].T + params["fc2_b"]


if __name__ == "__main__":
    B, T, INPUT_SIZE, HIDDEN, LAYERS = 2, 8, 8, 32, 2
    key = jax.random.PRNGKey(0)
    key, pkey, xkey = jax.random.split(key, 3)
    params = init_params(pkey, INPUT_SIZE, hidden_size=HIDDEN, num_layers=LAYERS)
    x = jax.random.normal(xkey, (B, T, INPUT_SIZE), dtype=jnp.float32)

    lstm_blocks, head_block = prepare_params(params)

    out = jax.block_until_ready(bitcoin_lstm_forward(x, lstm_blocks, head_block))
    assert out.shape == (B, 1), out.shape

    ref = jax.block_until_ready(_reference_forward(x, params))
    # bf16 MXU operands (f32 accumulate) -> slightly looser tolerance than pure f32.
    assert jnp.allclose(out, ref, atol=2e-2, rtol=2e-2), (out, ref)

    print("KERNEL_OK")
</pallas_src>

<mosaic_0001>
module attributes {stable_mosaic.version = 11 : i64} {
  func.func @kernel(%arg0: memref<64x8xbf16, #tpu.memory_space<vmem>>, %arg1: memref<41x128xf32, #tpu.memory_space<vmem>>, %arg2: memref<65x128xf32, #tpu.memory_space<vmem>>, %arg3: memref<35x128xf32, #tpu.memory_space<vmem>>, %arg4: memref<2x1xf32, #tpu.memory_space<vmem>>) attributes {dimension_semantics = [], scalar_prefetch = 0 : i64, scratch_operands = 0 : i64, tpu.core_type = #tpu.core_type<tc>} {
    %c0 = arith.constant 0 : index
    %c0_0 = arith.constant 0 : index
    %0 = vector.load %arg0[%c0, %c0_0] : memref<64x8xbf16, #tpu.memory_space<vmem>>, vector<64x8xbf16>
    %c0_1 = arith.constant 0 : index
    %c0_2 = arith.constant 0 : index
    %1 = vector.load %arg1[%c0_1, %c0_2] : memref<41x128xf32, #tpu.memory_space<vmem>>, vector<41x128xf32>
    %2 = vector.extract_strided_slice %1 {offsets = [0, 0], sizes = [8, 128], strides = [1, 1]} : vector<41x128xf32> to vector<8x128xf32>
    %3 = arith.truncf %2 : vector<8x128xf32> to vector<8x128xbf16>
    %4 = vector.extract_strided_slice %1 {offsets = [8, 0], sizes = [32, 128], strides = [1, 1]} : vector<41x128xf32> to vector<32x128xf32>
    %5 = arith.truncf %4 : vector<32x128xf32> to vector<32x128xbf16>
    %6 = vector.extract_strided_slice %1 {offsets = [40, 0], sizes = [1, 128], strides = [1, 1]} : vector<41x128xf32> to vector<1x128xf32>
    %cst = arith.constant dense<0.000000e+00> : vector<64x128xf32>
    %7 = tpu.matmul %0, %3, %cst {dimension_numbers = #tpu.dot_dimension_numbers<[1], [0], [0], [1], [0, 0, 1, 1], [], []>} : vector<64x8xbf16>, vector<8x128xbf16>, vector<64x128xf32> -> vector<64x128xf32>
    %8 = vector.broadcast %6 : vector<1x128xf32> to vector<64x128xf32>
    %9 = arith.addf %7, %8 : vector<64x128xf32>
    %cst_3 = arith.constant 0.000000e+00 : f32
    %10 = vector.broadcast %cst_3 : f32 to vector<8x32xf32>
    %cst_4 = arith.constant 0.000000e+00 : f32
    %11 = vector.broadcast %cst_4 : f32 to vector<8x32xf32>
    %12 = vector.extract_strided_slice %9 {offsets = [0, 0], sizes = [8, 128], strides = [1, 1]} : vector<64x128xf32> to vector<8x128xf32>
    %13 = arith.truncf %10 : vector<8x32xf32> to vector<8x32xbf16>
    %cst_5 = arith.constant dense<0.000000e+00> : vector<8x128xf32>
    %14 = tpu.matmul %13, %5, %cst_5 {dimension_numbers = #tpu.dot_dimension_numbers<[1], [0], [0], [1], [0, 0, 1, 1], [], []>} : vector<8x32xbf16>, vector<32x128xbf16>, vector<8x128xf32> -> vector<8x128xf32>
    %15 = arith.addf %12, %14 : vector<8x128xf32>
    %16 = arith.negf %15 : vector<8x128xf32>
    %17 = math.exp %16 : vector<8x128xf32>
    %cst_6 = arith.constant 1.000000e+00 : f32
    %18 = vector.broadcast %cst_6 : f32 to vector<8x128xf32>
    %19 = arith.addf %18, %17 : vector<8x128xf32>
    %20 = arith.divf %18, %19 : vector<8x128xf32>
    %21 = math.tanh %15 : vector<8x128xf32>
    %22 = vector.extract_strided_slice %20 {offsets = [0, 0], sizes = [8, 32], strides = [1, 1]} : vector<8x128xf32> to vector<8x32xf32>
    %23 = vector.extract_strided_slice %20 {offsets = [0, 32], sizes = [8, 32], strides = [1, 1]} : vector<8x128xf32> to vector<8x32xf32>
    %24 = vector.extract_strided_slice %21 {offsets = [0, 64], sizes = [8, 32], strides = [1, 1]} : vector<8x128xf32> to vector<8x32xf32>
    %25 = vector.extract_strided_slice %20 {offsets = [0, 96], sizes = [8, 32], strides = [1, 1]} : vector<8x128xf32> to vector<8x32xf32>
    %26 = arith.mulf %23, %11 : vector<8x32xf32>
    %27 = arith.mulf %22, %24 : vector<8x32xf32>
    %28 = arith.addf %26, %27 : vector<8x32xf32>
    %29 = math.tanh %28 : vector<8x32xf32>
    %30 = arith.mulf %25, %29 : vector<8x32xf32>
    %31 = vector.extract_strided_slice %9 {offsets = [8, 0], sizes = [8, 128], strides = [1, 1]} : vector<64x128xf32> to vector<8x128xf32>
    %32 = arith.truncf %30 : vector<8x32xf32> to vector<8x32xbf16>
    %cst_7 = arith.constant dense<0.000000e+00> : vector<8x128xf32>
    %33 = tpu.matmul %32, %5, %cst_7 {dimension_numbers = #tpu.dot_dimension_numbers<[1], [0], [0], [1], [0, 0, 1, 1], [], []>} : vector<8x32xbf16>, vector<32x128xbf16>, vector<8x128xf32> -> vector<8x128xf32>
    %34 = arith.addf %31, %33 : vector<8x128xf32>
    %35 = arith.negf %34 : vector<8x128xf32>
    %36 = math.exp %35 : vector<8x128xf32>
    %cst_8 = arith.constant 1.000000e+00 : f32
    %37 = vector.broadcast %cst_8 : f32 to vector<8x128xf32>
    %38 = arith.addf %37, %36 : vector<8x128xf32>
    %39 = arith.divf %37, %38 : vector<8x128xf32>
    %40 = math.tanh %34 : vector<8x128xf32>
    %41 = vector.extract_strided_slice %39 {offsets = [0, 0], sizes = [8, 32], strides = [1, 1]} : vector<8x128xf32> to vector<8x32xf32>
    %42 = vector.extract_strided_slice %39 {offsets = [0, 32], sizes = [8, 32], strides = [1, 1]} : vector<8x128xf32> to vector<8x32xf32>
    %43 = vector.extract_strided_slice %40 {offsets = [0, 64], sizes = [8, 32], strides = [1, 1]} : vector<8x128xf32> to vector<8x32xf32>
    %44 = vector.extract_strided_slice %39 {offsets = [0, 96], sizes = [8, 32], strides = [1, 1]} : vector<8x128xf32> to vector<8x32xf32>
    %45 = arith.mulf %42, %28 : vector<8x32xf32>
    %46 = arith.mulf %41, %43 : vector<8x32xf32>
    %47 = arith.addf %45, %46 : vector<8x32xf32>
    %48 = math.tanh %47 : vector<8x32xf32>
    %49 = arith.mulf %44, %48 : vector<8x32xf32>
    %50 = vector.extract_strided_slice %9 {offsets = [16, 0], sizes = [8, 128], strides = [1, 1]} : vector<64x128xf32> to vector<8x128xf32>
    %51 = arith.truncf %49 : vector<8x32xf32> to vector<8x32xbf16>
    %cst_9 = arith.constant dense<0.000000e+00> : vector<8x128xf32>
    %52 = tpu.matmul %51, %5, %cst_9 {dimension_numbers = #tpu.dot_dimension_numbers<[1], [0], [0], [1], [0, 0, 1, 1], [], []>} : vector<8x32xbf16>, vector<32x128xbf16>, vector<8x128xf32> -> vector<8x128xf32>
    %53 = arith.addf %50, %52 : vector<8x128xf32>
    %54 = arith.negf %53 : vector<8x128xf32>
    %55 = math.exp %54 : vector<8x128xf32>
    %cst_10 = arith.constant 1.000000e+00 : f32
    %56 = vector.broadcast %cst_10 : f32 to vector<8x128xf32>
    %57 = arith.addf %56, %55 : vector<8x128xf32>
    %58 = arith.divf %56, %57 : vector<8x128xf32>
    %59 = math.tanh %53 : vector<8x128xf32>
    %60 = vector.extract_strided_slice %58 {offsets = [0, 0], sizes = [8, 32], strides = [1, 1]} : vector<8x128xf32> to vector<8x32xf32>
    %61 = vector.extract_strided_slice %58 {offsets = [0, 32], sizes = [8, 32], strides = [1, 1]} : vector<8x128xf32> to vector<8x32xf32>
    %62 = vector.extract_strided_slice %59 {offsets = [0, 64], sizes = [8, 32], strides = [1, 1]} : vector<8x128xf32> to vector<8x32xf32>
    %63 = vector.extract_strided_slice %58 {offsets = [0, 96], sizes = [8, 32], strides = [1, 1]} : vector<8x128xf32> to vector<8x32xf32>
    %64 = arith.mulf %61, %47 : vector<8x32xf32>
    %65 = arith.mulf %60, %62 : vector<8x32xf32>
    %66 = arith.addf %64, %65 : vector<8x32xf32>
    %67 = math.tanh %66 : vector<8x32xf32>
    %68 = arith.mulf %63, %67 : vector<8x32xf32>
    %69 = vector.extract_strided_slice %9 {offsets = [24, 0], sizes = [8, 128], strides = [1, 1]} : vector<64x128xf32> to vector<8x128xf32>
    %70 = arith.truncf %68 : vector<8x32xf32> to vector<8x32xbf16>
    %cst_11 = arith.constant dense<0.000000e+00> : vector<8x128xf32>
    %71 = tpu.matmul %70, %5, %cst_11 {dimension_numbers = #tpu.dot_dimension_numbers<[1], [0], [0], [1], [0, 0, 1, 1], [], []>} : vector<8x32xbf16>, vector<32x128xbf16>, vector<8x128xf32> -> vector<8x128xf32>
    %72 = arith.addf %69, %71 : vector<8x128xf32>
    %73 = arith.negf %72 : vector<8x128xf32>
    %74 = math.exp %73 : vector<8x128xf32>
    %cst_12 = arith.constant 1.000000e+00 : f32
    %75 = vector.broadcast %cst_12 : f32 to vector<8x128xf32>
    %76 = arith.addf %75, %74 : vector<8x128xf32>
    %77 = arith.divf %75, %76 : vector<8x128xf32>
    %78 = math.tanh %72 : vector<8x128xf32>
    %79 = vector.extract_strided_slice %77 {offsets = [0, 0], sizes = [8, 32], strides = [1, 1]} : vector<8x128xf32> to vector<8x32xf32>
    %80 = vector.extract_strided_slice %77 {offsets = [0, 32], sizes = [8, 32], strides = [1, 1]} : vector<8x128xf32> to vector<8x32xf32>
    %81 = vector.extract_strided_slice %78 {offsets = [0, 64], sizes = [8, 32], strides = [1, 1]} : vector<8x128xf32> to vector<8x32xf32>
    %82 = vector.extract_strided_slice %77 {offsets = [0, 96], sizes = [8, 32], strides = [1, 1]} : vector<8x128xf32> to vector<8x32xf32>
    %83 = arith.mulf %80, %66 : vector<8x32xf32>
    %84 = arith.mulf %79, %81 : vector<8x32xf32>
    %85 = arith.addf %83, %84 : vector<8x32xf32>
    %86 = math.tanh %85 : vector<8x32xf32>
    %87 = arith.mulf %82, %86 : vector<8x32xf32>
    %88 = vector.extract_strided_slice %9 {offsets = [32, 0], sizes = [8, 128], strides = [1, 1]} : vector<64x128xf32> to vector<8x128xf32>
    %89 = arith.truncf %87 : vector<8x32xf32> to vector<8x32xbf16>
    %cst_13 = arith.constant dense<0.000000e+00> : vector<8x128xf32>
    %90 = tpu.matmul %89, %5, %cst_13 {dimension_numbers = #tpu.dot_dimension_numbers<[1], [0], [0], [1], [0, 0, 1, 1], [], []>} : vector<8x32xbf16>, vector<32x128xbf16>, vector<8x128xf32> -> vector<8x128xf32>
    %91 = arith.addf %88, %90 : vector<8x128xf32>
    %92 = arith.negf %91 : vector<8x128xf32>
    %93 = math.exp %92 : vector<8x128xf32>
    %cst_14 = arith.constant 1.000000e+00 : f32
    %94 = vector.broadcast %cst_14 : f32 to vector<8x128xf32>
    %95 = arith.addf %94, %93 : vector<8x128xf32>
    %96 = arith.divf %94, %95 : vector<8x128xf32>
    %97 = math.tanh %91 : vector<8x128xf32>
    %98 = vector.extract_strided_slice %96 {offsets = [0, 0], sizes = [8, 32], strides = [1, 1]} : vector<8x128xf32> to vector<8x32xf32>
    %99 = vector.extract_strided_slice %96 {offsets = [0, 32], sizes = [8, 32], strides = [1, 1]} : vector<8x128xf32> to vector<8x32xf32>
    %100 = vector.extract_strided_slice %97 {offsets = [0, 64], sizes = [8, 32], strides = [1, 1]} : vector<8x128xf32> to vector<8x32xf32>
    %101 = vector.extract_strided_slice %96 {offsets = [0, 96], sizes = [8, 32], strides = [1, 1]} : vector<8x128xf32> to vector<8x32xf32>
    %102 = arith.mulf %99, %85 : vector<8x32xf32>
    %103 = arith.mulf %98, %100 : vector<8x32xf32>
    %104 = arith.addf %102, %103 : vector<8x32xf32>
    %105 = math.tanh %104 : vector<8x32xf32>
    %106 = arith.mulf %101, %105 : vector<8x32xf32>
    %107 = vector.extract_strided_slice %9 {offsets = [40, 0], sizes = [8, 128], strides = [1, 1]} : vector<64x128xf32> to vector<8x128xf32>
    %108 = arith.truncf %106 : vector<8x32xf32> to vector<8x32xbf16>
    %cst_15 = arith.constant dense<0.000000e+00> : vector<8x128xf32>
    %109 = tpu.matmul %108, %5, %cst_15 {dimension_numbers = #tpu.dot_dimension_numbers<[1], [0], [0], [1], [0, 0, 1, 1], [], []>} : vector<8x32xbf16>, vector<32x128xbf16>, vector<8x128xf32> -> vector<8x128xf32>
    %110 = arith.addf %107, %109 : vector<8x128xf32>
    %111 = arith.negf %110 : vector<8x128xf32>
    %112 = math.exp %111 : vector<8x128xf32>
    %cst_16 = arith.constant 1.000000e+00 : f32
    %113 = vector.broadcast %cst_16 : f32 to vector<8x128xf32>
    %114 = arith.addf %113, %112 : vector<8x128xf32>
    %115 = arith.divf %113, %114 : vector<8x128xf32>
    %116 = math.tanh %110 : vector<8x128xf32>
    %117 = vector.extract_strided_slice %115 {offsets = [0, 0], sizes = [8, 32], strides = [1, 1]} : vector<8x128xf32> to vector<8x32xf32>
    %118 = vector.extract_strided_slice %115 {offsets = [0, 32], sizes = [8, 32], strides = [1, 1]} : vector<8x128xf32> to vector<8x32xf32>
    %119 = vector.extract_strided_slice %116 {offsets = [0, 64], sizes = [8, 32], strides = [1, 1]} : vector<8x128xf32> to vector<8x32xf32>
    %120 = vector.extract_strided_slice %115 {offsets = [0, 96], sizes = [8, 32], strides = [1, 1]} : vector<8x128xf32> to vector<8x32xf32>
    %121 = arith.mulf %118, %104 : vector<8x32xf32>
    %122 = arith.mulf %117, %119 : vector<8x32xf32>
    %123 = arith.addf %121, %122 : vector<8x32xf32>
    %124 = math.tanh %123 : vector<8x32xf32>
    %125 = arith.mulf %120, %124 : vector<8x32xf32>
    %126 = vector.extract_strided_slice %9 {offsets = [48, 0], sizes = [8, 128], strides = [1, 1]} : vector<64x128xf32> to vector<8x128xf32>
    %127 = arith.truncf %125 : vector<8x32xf32> to vector<8x32xbf16>
    %cst_17 = arith.constant dense<0.000000e+00> : vector<8x128xf32>
    %128 = tpu.matmul %127, %5, %cst_17 {dimension_numbers = #tpu.dot_dimension_numbers<[1], [0], [0], [1], [0, 0, 1, 1], [], []>} : vector<8x32xbf16>, vector<32x128xbf16>, vector<8x128xf32> -> vector<8x128xf32>
    %129 = arith.addf %126, %128 : vector<8x128xf32>
    %130 = arith.negf %129 : vector<8x128xf32>
    %131 = math.exp %130 : vector<8x128xf32>
    %cst_18 = arith.constant 1.000000e+00 : f32
    %132 = vector.broadcast %cst_18 : f32 to vector<8x128xf32>
    %133 = arith.addf %132, %131 : vector<8x128xf32>
    %134 = arith.divf %132, %133 : vector<8x128xf32>
    %135 = math.tanh %129 : vector<8x128xf32>
    %136 = vector.extract_strided_slice %134 {offsets = [0, 0], sizes = [8, 32], strides = [1, 1]} : vector<8x128xf32> to vector<8x32xf32>
    %137 = vector.extract_strided_slice %134 {offsets = [0, 32], sizes = [8, 32], strides = [1, 1]} : vector<8x128xf32> to vector<8x32xf32>
    %138 = vector.extract_strided_slice %135 {offsets = [0, 64], sizes = [8, 32], strides = [1, 1]} : vector<8x128xf32> to vector<8x32xf32>
    %139 = vector.extract_strided_slice %134 {offsets = [0, 96], sizes = [8, 32], strides = [1, 1]} : vector<8x128xf32> to vector<8x32xf32>
    %140 = arith.mulf %137, %123 : vector<8x32xf32>
    %141 = arith.mulf %136, %138 : vector<8x32xf32>
    %142 = arith.addf %140, %141 : vector<8x32xf32>
    %143 = math.tanh %142 : vector<8x32xf32>
    %144 = arith.mulf %139, %143 : vector<8x32xf32>
    %145 = vector.extract_strided_slice %9 {offsets = [56, 0], sizes = [8, 128], strides = [1, 1]} : vector<64x128xf32> to vector<8x128xf32>
    %146 = arith.truncf %144 : vector<8x32xf32> to vector<8x32xbf16>
    %cst_19 = arith.constant dense<0.000000e+00> : vector<8x128xf32>
    %147 = tpu.matmul %146, %5, %cst_19 {dimension_numbers = #tpu.dot_dimension_numbers<[1], [0], [0], [1], [0, 0, 1, 1], [], []>} : vector<8x32xbf16>, vector<32x128xbf16>, vector<8x128xf32> -> vector<8x128xf32>
    %148 = arith.addf %145, %147 : vector<8x128xf32>
    %149 = arith.negf %148 : vector<8x128xf32>
    %150 = math.exp %149 : vector<8x128xf32>
    %cst_20 = arith.constant 1.000000e+00 : f32
    %151 = vector.broadcast %cst_20 : f32 to vector<8x128xf32>
    %152 = arith.addf %151, %150 : vector<8x128xf32>
    %153 = arith.divf %151, %152 : vector<8x128xf32>
    %154 = math.tanh %148 : vector<8x128xf32>
    %155 = vector.extract_strided_slice %153 {offsets = [0, 0], sizes = [8, 32], strides = [1, 1]} : vector<8x128xf32> to vector<8x32xf32>
    %156 = vector.extract_strided_slice %153 {offsets = [0, 32], sizes = [8, 32], strides = [1, 1]} : vector<8x128xf32> to vector<8x32xf32>
    %157 = vector.extract_strided_slice %154 {offsets = [0, 64], sizes = [8, 32], strides = [1, 1]} : vector<8x128xf32> to vector<8x32xf32>
    %158 = vector.extract_strided_slice %153 {offsets = [0, 96], sizes = [8, 32], strides = [1, 1]} : vector<8x128xf32> to vector<8x32xf32>
    %159 = arith.mulf %156, %142 : vector<8x32xf32>
    %160 = arith.mulf %155, %157 : vector<8x32xf32>
    %161 = arith.addf %159, %160 : vector<8x32xf32>
    %162 = math.tanh %161 : vector<8x32xf32>
    %163 = arith.mulf %158, %162 : vector<8x32xf32>
    %164 = tpu.concatenate %30, %49, %68, %87, %106, %125, %144, %163 in 0 : vector<8x32xf32>, vector<8x32xf32>, vector<8x32xf32>, vector<8x32xf32>, vector<8x32xf32>, vector<8x32xf32>, vector<8x32xf32>, vector<8x32xf32> -> vector<64x32xf32>
    %165 = arith.truncf %164 : vector<64x32xf32> to vector<64x32xbf16>
    %c0_21 = arith.constant 0 : index
    %c0_22 = arith.constant 0 : index
    %166 = vector.load %arg2[%c0_21, %c0_22] : memref<65x128xf32, #tpu.memory_space<vmem>>, vector<65x128xf32>
    %167 = vector.extract_strided_slice %166 {offsets = [0, 0], sizes = [32, 128], strides = [1, 1]} : vector<65x128xf32> to vector<32x128xf32>
    %168 = arith.truncf %167 : vector<32x128xf32> to vector<32x128xbf16>
    %169 = vector.extract_strided_slice %166 {offsets = [32, 0], sizes = [32, 128], strides = [1, 1]} : vector<65x128xf32> to vector<32x128xf32>
    %170 = arith.truncf %169 : vector<32x128xf32> to vector<32x128xbf16>
    %171 = vector.extract_strided_slice %166 {offsets = [64, 0], sizes = [1, 128], strides = [1, 1]} : vector<65x128xf32> to vector<1x128xf32>
    %cst_23 = arith.constant dense<0.000000e+00> : vector<64x128xf32>
    %172 = tpu.matmul %165, %168, %cst_23 {dimension_numbers = #tpu.dot_dimension_numbers<[1], [0], [0], [1], [0, 0, 1, 1], [], []>} : vector<64x32xbf16>, vector<32x128xbf16>, vector<64x128xf32> -> vector<64x128xf32>
    %173 = vector.broadcast %171 : vector<1x128xf32> to vector<64x128xf32>
    %174 = arith.addf %172, %173 : vector<64x128xf32>
    %cst_24 = arith.constant 0.000000e+00 : f32
    %175 = vector.broadcast %cst_24 : f32 to vector<8x32xf32>
    %cst_25 = arith.constant 0.000000e+00 : f32
    %176 = vector.broadcast %cst_25 : f32 to vector<8x32xf32>
    %177 = vector.extract_strided_slice %174 {offsets = [0, 0], sizes = [8, 128], strides = [1, 1]} : vector<64x128xf32> to vector<8x128xf32>
    %178 = arith.truncf %175 : vector<8x32xf32> to vector<8x32xbf16>
    %cst_26 = arith.constant dense<0.000000e+00> : vector<8x128xf32>
    %179 = tpu.matmul %178, %170, %cst_26 {dimension_numbers = #tpu.dot_dimension_numbers<[1], [0], [0], [1], [0, 0, 1, 1], [], []>} : vector<8x32xbf16>, vector<32x128xbf16>, vector<8x128xf32> -> vector<8x128xf32>
    %180 = arith.addf %177, %179 : vector<8x128xf32>
    %181 = arith.negf %180 : vector<8x128xf32>
    %182 = math.exp %181 : vector<8x128xf32>
    %cst_27 = arith.constant 1.000000e+00 : f32
    %183 = vector.broadcast %cst_27 : f32 to vector<8x128xf32>
    %184 = arith.addf %183, %182 : vector<8x128xf32>
    %185 = arith.divf %183, %184 : vector<8x128xf32>
    %186 = math.tanh %180 : vector<8x128xf32>
    %187 = vector.extract_strided_slice %185 {offsets = [0, 0], sizes = [8, 32], strides = [1, 1]} : vector<8x128xf32> to vector<8x32xf32>
    %188 = vector.extract_strided_slice %185 {offsets = [0, 32], sizes = [8, 32], strides = [1, 1]} : vector<8x128xf32> to vector<8x32xf32>
    %189 = vector.extract_strided_slice %186 {offsets = [0, 64], sizes = [8, 32], strides = [1, 1]} : vector<8x128xf32> to vector<8x32xf32>
    %190 = vector.extract_strided_slice %185 {offsets = [0, 96], sizes = [8, 32], strides = [1, 1]} : vector<8x128xf32> to vector<8x32xf32>
    %191 = arith.mulf %188, %176 : vector<8x32xf32>
    %192 = arith.mulf %187, %189 : vector<8x32xf32>
    %193 = arith.addf %191, %192 : vector<8x32xf32>
    %194 = math.tanh %193 : vector<8x32xf32>
    %195 = arith.mulf %190, %194 : vector<8x32xf32>
    %196 = vector.extract_strided_slice %174 {offsets = [8, 0], sizes = [8, 128], strides = [1, 1]} : vector<64x128xf32> to vector<8x128xf32>
    %197 = arith.truncf %195 : vector<8x32xf32> to vector<8x32xbf16>
    %cst_28 = arith.constant dense<0.000000e+00> : vector<8x128xf32>
    %198 = tpu.matmul %197, %170, %cst_28 {dimension_numbers = #tpu.dot_dimension_numbers<[1], [0], [0], [1], [0, 0, 1, 1], [], []>} : vector<8x32xbf16>, vector<32x128xbf16>, vector<8x128xf32> -> vector<8x128xf32>
    %199 = arith.addf %196, %198 : vector<8x128xf32>
    %200 = arith.negf %199 : vector<8x128xf32>
    %201 = math.exp %200 : vector<8x128xf32>
    %cst_29 = arith.constant 1.000000e+00 : f32
    %202 = vector.broadcast %cst_29 : f32 to vector<8x128xf32>
    %203 = arith.addf %202, %201 : vector<8x128xf32>
    %204 = arith.divf %202, %203 : vector<8x128xf32>
    %205 = math.tanh %199 : vector<8x128xf32>
    %206 = vector.extract_strided_slice %204 {offsets = [0, 0], sizes = [8, 32], strides = [1, 1]} : vector<8x128xf32> to vector<8x32xf32>
    %207 = vector.extract_strided_slice %204 {offsets = [0, 32], sizes = [8, 32], strides = [1, 1]} : vector<8x128xf32> to vector<8x32xf32>
    %208 = vector.extract_strided_slice %205 {offsets = [0, 64], sizes = [8, 32], strides = [1, 1]} : vector<8x128xf32> to vector<8x32xf32>
    %209 = vector.extract_strided_slice %204 {offsets = [0, 96], sizes = [8, 32], strides = [1, 1]} : vector<8x128xf32> to vector<8x32xf32>
    %210 = arith.mulf %207, %193 : vector<8x32xf32>
    %211 = arith.mulf %206, %208 : vector<8x32xf32>
    %212 = arith.addf %210, %211 : vector<8x32xf32>
    %213 = math.tanh %212 : vector<8x32xf32>
    %214 = arith.mulf %209, %213 : vector<8x32xf32>
    %215 = vector.extract_strided_slice %174 {offsets = [16, 0], sizes = [8, 128], strides = [1, 1]} : vector<64x128xf32> to vector<8x128xf32>
    %216 = arith.truncf %214 : vector<8x32xf32> to vector<8x32xbf16>
    %cst_30 = arith.constant dense<0.000000e+00> : vector<8x128xf32>
    %217 = tpu.matmul %216, %170, %cst_30 {dimension_numbers = #tpu.dot_dimension_numbers<[1], [0], [0], [1], [0, 0, 1, 1], [], []>} : vector<8x32xbf16>, vector<32x128xbf16>, vector<8x128xf32> -> vector<8x128xf32>
    %218 = arith.addf %215, %217 : vector<8x128xf32>
    %219 = arith.negf %218 : vector<8x128xf32>
    %220 = math.exp %219 : vector<8x128xf32>
    %cst_31 = arith.constant 1.000000e+00 : f32
    %221 = vector.broadcast %cst_31 : f32 to vector<8x128xf32>
    %222 = arith.addf %221, %220 : vector<8x128xf32>
    %223 = arith.divf %221, %222 : vector<8x128xf32>
    %224 = math.tanh %218 : vector<8x128xf32>
    %225 = vector.extract_strided_slice %223 {offsets = [0, 0], sizes = [8, 32], strides = [1, 1]} : vector<8x128xf32> to vector<8x32xf32>
    %226 = vector.extract_strided_slice %223 {offsets = [0, 32], sizes = [8, 32], strides = [1, 1]} : vector<8x128xf32> to vector<8x32xf32>
    %227 = vector.extract_strided_slice %224 {offsets = [0, 64], sizes = [8, 32], strides = [1, 1]} : vector<8x128xf32> to vector<8x32xf32>
    %228 = vector.extract_strided_slice %223 {offsets = [0, 96], sizes = [8, 32], strides = [1, 1]} : vector<8x128xf32> to vector<8x32xf32>
    %229 = arith.mulf %226, %212 : vector<8x32xf32>
    %230 = arith.mulf %225, %227 : vector<8x32xf32>
    %231 = arith.addf %229, %230 : vector<8x32xf32>
    %232 = math.tanh %231 : vector<8x32xf32>
    %233 = arith.mulf %228, %232 : vector<8x32xf32>
    %234 = vector.extract_strided_slice %174 {offsets = [24, 0], sizes = [8, 128], strides = [1, 1]} : vector<64x128xf32> to vector<8x128xf32>
    %235 = arith.truncf %233 : vector<8x32xf32> to vector<8x32xbf16>
    %cst_32 = arith.constant dense<0.000000e+00> : vector<8x128xf32>
    %236 = tpu.matmul %235, %170, %cst_32 {dimension_numbers = #tpu.dot_dimension_numbers<[1], [0], [0], [1], [0, 0, 1, 1], [], []>} : vector<8x32xbf16>, vector<32x128xbf16>, vector<8x128xf32> -> vector<8x128xf32>
    %237 = arith.addf %234, %236 : vector<8x128xf32>
    %238 = arith.negf %237 : vector<8x128xf32>
    %239 = math.exp %238 : vector<8x128xf32>
    %cst_33 = arith.constant 1.000000e+00 : f32
    %240 = vector.broadcast %cst_33 : f32 to vector<8x128xf32>
    %241 = arith.addf %240, %239 : vector<8x128xf32>
    %242 = arith.divf %240, %241 : vector<8x128xf32>
    %243 = math.tanh %237 : vector<8x128xf32>
    %244 = vector.extract_strided_slice %242 {offsets = [0, 0], sizes = [8, 32], strides = [1, 1]} : vector<8x128xf32> to vector<8x32xf32>
    %245 = vector.extract_strided_slice %242 {offsets = [0, 32], sizes = [8, 32], strides = [1, 1]} : vector<8x128xf32> to vector<8x32xf32>
    %246 = vector.extract_strided_slice %243 {offsets = [0, 64], sizes = [8, 32], strides = [1, 1]} : vector<8x128xf32> to vector<8x32xf32>
    %247 = vector.extract_strided_slice %242 {offsets = [0, 96], sizes = [8, 32], strides = [1, 1]} : vector<8x128xf32> to vector<8x32xf32>
    %248 = arith.mulf %245, %231 : vector<8x32xf32>
    %249 = arith.mulf %244, %246 : vector<8x32xf32>
    %250 = arith.addf %248, %249 : vector<8x32xf32>
    %251 = math.tanh %250 : vector<8x32xf32>
    %252 = arith.mulf %247, %251 : vector<8x32xf32>
    %253 = vector.extract_strided_slice %174 {offsets = [32, 0], sizes = [8, 128], strides = [1, 1]} : vector<64x128xf32> to vector<8x128xf32>
    %254 = arith.truncf %252 : vector<8x32xf32> to vector<8x32xbf16>
    %cst_34 = arith.constant dense<0.000000e+00> : vector<8x128xf32>
    %255 = tpu.matmul %254, %170, %cst_34 {dimension_numbers = #tpu.dot_dimension_numbers<[1], [0], [0], [1], [0, 0, 1, 1], [], []>} : vector<8x32xbf16>, vector<32x128xbf16>, vector<8x128xf32> -> vector<8x128xf32>
    %256 = arith.addf %253, %255 : vector<8x128xf32>
    %257 = arith.negf %256 : vector<8x128xf32>
    %258 = math.exp %257 : vector<8x128xf32>
    %cst_35 = arith.constant 1.000000e+00 : f32
    %259 = vector.broadcast %cst_35 : f32 to vector<8x128xf32>
    %260 = arith.addf %259, %258 : vector<8x128xf32>
    %261 = arith.divf %259, %260 : vector<8x128xf32>
    %262 = math.tanh %256 : vector<8x128xf32>
    %263 = vector.extract_strided_slice %261 {offsets = [0, 0], sizes = [8, 32], strides = [1, 1]} : vector<8x128xf32> to vector<8x32xf32>
    %264 = vector.extract_strided_slice %261 {offsets = [0, 32], sizes = [8, 32], strides = [1, 1]} : vector<8x128xf32> to vector<8x32xf32>
    %265 = vector.extract_strided_slice %262 {offsets = [0, 64], sizes = [8, 32], strides = [1, 1]} : vector<8x128xf32> to vector<8x32xf32>
    %266 = vector.extract_strided_slice %261 {offsets = [0, 96], sizes = [8, 32], strides = [1, 1]} : vector<8x128xf32> to vector<8x32xf32>
    %267 = arith.mulf %264, %250 : vector<8x32xf32>
    %268 = arith.mulf %263, %265 : vector<8x32xf32>
    %269 = arith.addf %267, %268 : vector<8x32xf32>
    %270 = math.tanh %269 : vector<8x32xf32>
    %271 = arith.mulf %266, %270 : vector<8x32xf32>
    %272 = vector.extract_strided_slice %174 {offsets = [40, 0], sizes = [8, 128], strides = [1, 1]} : vector<64x128xf32> to vector<8x128xf32>
    %273 = arith.truncf %271 : vector<8x32xf32> to vector<8x32xbf16>
    %cst_36 = arith.constant dense<0.000000e+00> : vector<8x128xf32>
    %274 = tpu.matmul %273, %170, %cst_36 {dimension_numbers = #tpu.dot_dimension_numbers<[1], [0], [0], [1], [0, 0, 1, 1], [], []>} : vector<8x32xbf16>, vector<32x128xbf16>, vector<8x128xf32> -> vector<8x128xf32>
    %275 = arith.addf %272, %274 : vector<8x128xf32>
    %276 = arith.negf %275 : vector<8x128xf32>
    %277 = math.exp %276 : vector<8x128xf32>
    %cst_37 = arith.constant 1.000000e+00 : f32
    %278 = vector.broadcast %cst_37 : f32 to vector<8x128xf32>
    %279 = arith.addf %278, %277 : vector<8x128xf32>
    %280 = arith.divf %278, %279 : vector<8x128xf32>
    %281 = math.tanh %275 : vector<8x128xf32>
    %282 = vector.extract_strided_slice %280 {offsets = [0, 0], sizes = [8, 32], strides = [1, 1]} : vector<8x128xf32> to vector<8x32xf32>
    %283 = vector.extract_strided_slice %280 {offsets = [0, 32], sizes = [8, 32], strides = [1, 1]} : vector<8x128xf32> to vector<8x32xf32>
    %284 = vector.extract_strided_slice %281 {offsets = [0, 64], sizes = [8, 32], strides = [1, 1]} : vector<8x128xf32> to vector<8x32xf32>
    %285 = vector.extract_strided_slice %280 {offsets = [0, 96], sizes = [8, 32], strides = [1, 1]} : vector<8x128xf32> to vector<8x32xf32>
    %286 = arith.mulf %283, %269 : vector<8x32xf32>
    %287 = arith.mulf %282, %284 : vector<8x32xf32>
    %288 = arith.addf %286, %287 : vector<8x32xf32>
    %289 = math.tanh %288 : vector<8x32xf32>
    %290 = arith.mulf %285, %289 : vector<8x32xf32>
    %291 = vector.extract_strided_slice %174 {offsets = [48, 0], sizes = [8, 128], strides = [1, 1]} : vector<64x128xf32> to vector<8x128xf32>
    %292 = arith.truncf %290 : vector<8x32xf32> to vector<8x32xbf16>
    %cst_38 = arith.constant dense<0.000000e+00> : vector<8x128xf32>
    %293 = tpu.matmul %292, %170, %cst_38 {dimension_numbers = #tpu.dot_dimension_numbers<[1], [0], [0], [1], [0, 0, 1, 1], [], []>} : vector<8x32xbf16>, vector<32x128xbf16>, vector<8x128xf32> -> vector<8x128xf32>
    %294 = arith.addf %291, %293 : vector<8x128xf32>
    %295 = arith.negf %294 : vector<8x128xf32>
    %296 = math.exp %295 : vector<8x128xf32>
    %cst_39 = arith.constant 1.000000e+00 : f32
    %297 = vector.broadcast %cst_39 : f32 to vector<8x128xf32>
    %298 = arith.addf %297, %296 : vector<8x128xf32>
    %299 = arith.divf %297, %298 : vector<8x128xf32>
    %300 = math.tanh %294 : vector<8x128xf32>
    %301 = vector.extract_strided_slice %299 {offsets = [0, 0], sizes = [8, 32], strides = [1, 1]} : vector<8x128xf32> to vector<8x32xf32>
    %302 = vector.extract_strided_slice %299 {offsets = [0, 32], sizes = [8, 32], strides = [1, 1]} : vector<8x128xf32> to vector<8x32xf32>
    %303 = vector.extract_strided_slice %300 {offsets = [0, 64], sizes = [8, 32], strides = [1, 1]} : vector<8x128xf32> to vector<8x32xf32>
    %304 = vector.extract_strided_slice %299 {offsets = [0, 96], sizes = [8, 32], strides = [1, 1]} : vector<8x128xf32> to vector<8x32xf32>
    %305 = arith.mulf %302, %288 : vector<8x32xf32>
    %306 = arith.mulf %301, %303 : vector<8x32xf32>
    %307 = arith.addf %305, %306 : vector<8x32xf32>
    %308 = math.tanh %307 : vector<8x32xf32>
    %309 = arith.mulf %304, %308 : vector<8x32xf32>
    %310 = vector.extract_strided_slice %174 {offsets = [56, 0], sizes = [8, 128], strides = [1, 1]} : vector<64x128xf32> to vector<8x128xf32>
    %311 = arith.truncf %309 : vector<8x32xf32> to vector<8x32xbf16>
    %cst_40 = arith.constant dense<0.000000e+00> : vector<8x128xf32>
    %312 = tpu.matmul %311, %170, %cst_40 {dimension_numbers = #tpu.dot_dimension_numbers<[1], [0], [0], [1], [0, 0, 1, 1], [], []>} : vector<8x32xbf16>, vector<32x128xbf16>, vector<8x128xf32> -> vector<8x128xf32>
    %313 = arith.addf %310, %312 : vector<8x128xf32>
    %314 = arith.negf %313 : vector<8x128xf32>
    %315 = math.exp %314 : vector<8x128xf32>
    %cst_41 = arith.constant 1.000000e+00 : f32
    %316 = vector.broadcast %cst_41 : f32 to vector<8x128xf32>
    %317 = arith.addf %316, %315 : vector<8x128xf32>
    %318 = arith.divf %316, %317 : vector<8x128xf32>
    %319 = math.tanh %313 : vector<8x128xf32>
    %320 = vector.extract_strided_slice %318 {offsets = [0, 0], sizes = [8, 32], strides = [1, 1]} : vector<8x128xf32> to vector<8x32xf32>
    %321 = vector.extract_strided_slice %318 {offsets = [0, 32], sizes = [8, 32], strides = [1, 1]} : vector<8x128xf32> to vector<8x32xf32>
    %322 = vector.extract_strided_slice %319 {offsets = [0, 64], sizes = [8, 32], strides = [1, 1]} : vector<8x128xf32> to vector<8x32xf32>
    %323 = vector.extract_strided_slice %318 {offsets = [0, 96], sizes = [8, 32], strides = [1, 1]} : vector<8x128xf32> to vector<8x32xf32>
    %324 = arith.mulf %321, %307 : vector<8x32xf32>
    %325 = arith.mulf %320, %322 : vector<8x32xf32>
    %326 = arith.addf %324, %325 : vector<8x32xf32>
    %327 = math.tanh %326 : vector<8x32xf32>
    %328 = arith.mulf %323, %327 : vector<8x32xf32>
    %c0_42 = arith.constant 0 : index
    %c0_43 = arith.constant 0 : index
    %329 = vector.load %arg3[%c0_42, %c0_43] : memref<35x128xf32, #tpu.memory_space<vmem>>, vector<35x128xf32>
    %330 = vector.extract_strided_slice %329 {offsets = [0, 0], sizes = [32, 128], strides = [1, 1]} : vector<35x128xf32> to vector<32x128xf32>
    %331 = vector.extract_strided_slice %329 {offsets = [32, 0], sizes = [1, 128], strides = [1, 1]} : vector<35x128xf32> to vector<1x128xf32>
    %332 = vector.extract_strided_slice %329 {offsets = [33, 0], sizes = [1, 128], strides = [1, 1]} : vector<35x128xf32> to vector<1x128xf32>
    %333 = vector.extract_strided_slice %329 {offsets = [34, 0], sizes = [1, 1], strides = [1, 1]} : vector<35x128xf32> to vector<1x1xf32>
    %cst_44 = arith.constant dense<0.000000e+00> : vector<8x128xf32>
    %334 = tpu.matmul %328, %330, %cst_44 {dimension_numbers = #tpu.dot_dimension_numbers<[1], [0], [0], [1], [0, 0, 1, 1], [], []>} : vector<8x32xf32>, vector<32x128xf32>, vector<8x128xf32> -> vector<8x128xf32>
    %335 = vector.broadcast %331 : vector<1x128xf32> to vector<8x128xf32>
    %336 = arith.addf %334, %335 : vector<8x128xf32>
    %cst_45 = arith.constant 0.000000e+00 : f32
    %337 = vector.broadcast %cst_45 : f32 to vector<8x128xf32>
    %338 = arith.maximumf %336, %337 : vector<8x128xf32>
    %339 = vector.broadcast %332 : vector<1x128xf32> to vector<8x128xf32>
    %340 = arith.mulf %338, %339 : vector<8x128xf32>
    %cst_46 = arith.constant dense<0.000000e+00> : vector<8xf32>
    %341 = vector.multi_reduction <add>, %340, %cst_46 [1] : vector<8x128xf32> to vector<8xf32>
    %342 = vector.shape_cast %341 : vector<8xf32> to vector<8x1xf32>
    %343 = vector.broadcast %333 : vector<1x1xf32> to vector<8x1xf32>
    %344 = arith.addf %342, %343 : vector<8x1xf32>
    %345 = vector.extract_strided_slice %344 {offsets = [0, 0], sizes = [2, 1], strides = [1, 1]} : vector<8x1xf32> to vector<2x1xf32>
    %c0_47 = arith.constant 0 : index
    %c0_48 = arith.constant 0 : index
    %346 = vector.load %arg4[%c0_47, %c0_48] : memref<2x1xf32, #tpu.memory_space<vmem>>, vector<2x1xf32>
    tpu.vector_store %arg4[%c0_47, %c0_48], %345 {strides = array<i32>} : memref<2x1xf32, #tpu.memory_space<vmem>>, vector<2x1xf32>,
    return
  }
}

</mosaic_0001>

<llo_original>
// kernel: bitcoin_lstm_forward.1
$region0: #{bitcoin_lstm_forward.1}
  #allocation0 [shape = 'u32[]', space=smem, size = 0x4, offset = 0x4, fixed_abs, tag = 'smem constant byte address 0x4 - core index']
  #allocation1 [shape = 'u32[144,128]{1,0:T(1,128)}', space=vmem, size = 0x12000, scoped, tag = 'internal scratch']
  %s0 = inlined_call_operand.vmem [shape: bf16[64,8], index: 0, kind: input, shape index: {}]
  %s1 = inlined_call_operand.hbm [shape: f32[41,128], index: 1, kind: input, shape index: {}]
  %s2 = inlined_call_operand.vmem [shape: f32[65,128], index: 2, kind: input, shape index: {}]
  %s3 = inlined_call_operand.hbm [shape: f32[35,128], index: 3, kind: input, shape index: {}]
  %s4 = inlined_call_operand.vmem [shape: f32[2,1], index: 4, kind: output, shape index: {}]
  %s5 = sld [smem:[#allocation0]]
  $region34: #{bitcoin_lstm_forward.1} parent=0
    _
  %s7 = ssub.s32 1, %s5
  %s8 = scalar_select 0, %s7, %s5
  $region1: #{bitcoin_lstm_forward.1} parent=0
    #allocation2 [shape = 'u8[24576]{0}', space=vmem, size = 0x6000, scoped, tag = 'input window, operand 1, single buffered']
    #allocation3 [shape = 's32[1]{0}', space=sflag, size = 0x4, scoped, tag = 'scoped memory for bitcoin_lstm_forward.1']
    #allocation4 [shape = 'u8[20480]{0}', space=vmem, size = 0x5000, scoped, tag = 'input window, operand 3, single buffered']
    #allocation5 [shape = 's32[1]{0}', space=sflag, size = 0x4, scoped, tag = 'scoped memory for bitcoin_lstm_forward.1']
    %9 = vsyncpa [#allocation3], 0
    %10 = vsyncpa [#allocation5], 0
    // Predicated region
    $region2: #{bitcoin_lstm_forward.1} parent=1 // pred_check
      _
    $region3: #{bitcoin_lstm_forward.1} parent=1 // pred_check_branch
      %12 = sbr.rel (0) target = $region5
    $region4: #{bitcoin_lstm_forward.1} parent=1 // pred_region
      _
    $region5: #{bitcoin_lstm_forward.1} parent=1 // pred_fallthru
      _
    // Predicated region
    $region6: #{bitcoin_lstm_forward.1} parent=1 // pred_check
      _
    $region7: #{bitcoin_lstm_forward.1} parent=1 // pred_check_branch
      %14 = sbr.rel (0) target = $region9
    $region8: #{bitcoin_lstm_forward.1} parent=1 // pred_region
      %s16 = ssub.s32 768, 768
      %17 = vsyncadd [#allocation3], %s16
      %s18 = sshll.u32 [#allocation2], 4
      %s19 = int_to_ptr.vmem [resolvable:$true] %s18
      %24 = dma.hbm_to_vmem [thread:$0]  %s1, 768, %s19, [#allocation3], 128, 128, 8
    $region9: #{bitcoin_lstm_forward.1} parent=1 // pred_fallthru
      _
    // Predicated region
    $region10: #{bitcoin_lstm_forward.1} parent=1 // pred_check
      _
    $region11: #{bitcoin_lstm_forward.1} parent=1 // pred_check_branch
      %26 = sbr.rel (0) target = $region13
    $region12: #{bitcoin_lstm_forward.1} parent=1 // pred_region
      _
    $region13: #{bitcoin_lstm_forward.1} parent=1 // pred_fallthru
      _
    // Predicated region
    $region14: #{bitcoin_lstm_forward.1} parent=1 // pred_check
      _
    $region15: #{bitcoin_lstm_forward.1} parent=1 // pred_check_branch
      %28 = sbr.rel (0) target = $region17
    $region16: #{bitcoin_lstm_forward.1} parent=1 // pred_region
      %s30 = ssub.s32 640, 640
      %31 = vsyncadd [#allocation5], %s30
      %s32 = sshll.u32 [#allocation4], 4
      %s33 = int_to_ptr.vmem [resolvable:$true] %s32
      %38 = dma.hbm_to_vmem [thread:$0]  %s3, 640, %s33, [#allocation5], 128, 128, 8
    $region17: #{bitcoin_lstm_forward.1} parent=1 // pred_fallthru
      _
    // Predicated region
    $region18: #{bitcoin_lstm_forward.1} parent=1 // pred_check
      _
    $region19: #{bitcoin_lstm_forward.1} parent=1 // pred_check_branch
      %40 = sbr.rel (0) target = $region21
    $region20: #{bitcoin_lstm_forward.1} parent=1 // pred_region
      %41 = dma.done [#allocation3], 768
    $region21: #{bitcoin_lstm_forward.1} parent=1 // pred_fallthru
      _
    // Predicated region
    $region22: #{bitcoin_lstm_forward.1} parent=1 // pred_check
      _
    $region23: #{bitcoin_lstm_forward.1} parent=1 // pred_check_branch
      %43 = sbr.rel (0) target = $region25
    $region24: #{bitcoin_lstm_forward.1} parent=1 // pred_region
      %44 = dma.done [#allocation5], 640
    $region25: #{bitcoin_lstm_forward.1} parent=1 // pred_fallthru
      _
    %v46 = vld [vmem:[%s0] sm:$0xf]
    %v47 = vld [vmem:[%s0 + $0x4] sm:$0xf]
    %v48 = vld [vmem:[%s0 + $0x8] sm:$0xf]
    %v49 = vld [vmem:[%s0 + $0xc] sm:$0xf]
    %v50 = vld [vmem:[%s0 + $0x10] sm:$0xf]
    %v51 = vld [vmem:[%s0 + $0x14] sm:$0xf]
    %v52 = vld [vmem:[%s0 + $0x18] sm:$0xf]
    %v53 = vld [vmem:[%s0 + $0x1c] sm:$0xf]
    %v54 = vld [vmem:[#allocation2] sm:$0xff]
    %v55 = vld [vmem:[#allocation2 + $0x8] sm:$0xff]
    %v56 = vld [vmem:[#allocation2 + $0x10] sm:$0xff]
    %v57 = vld [vmem:[#allocation2 + $0x18] sm:$0xff]
    %v58 = vld [vmem:[#allocation2 + $0x20] sm:$0xff]
    %v59 = vld [vmem:[#allocation2 + $0x28] sm:$0x1]
    %v60 = vpack.c.bf16 %v54, %v54
    %v61 = vpack.c.bf16 %v56, %v55
    %v62 = vpack.c.bf16 %v58, %v57
    %v63 = vlaneseq
    %v64 = vshrl.u32 %v63, 7
    %v65 = vsub.s32 0, %v64
    %v66 = vrot.slane %v59, %v65
    %v75 = vunpack.c.l.b16 %v46
    %v76 = vunpack.c.l.b16 %v47
    %v77 = vunpack.c.l.b16 %v48
    %v78 = vunpack.c.l.b16 %v49
    %v79 = vunpack.c.l.b16 %v50
    %v80 = vunpack.c.l.b16 %v51
    %v81 = vunpack.c.l.b16 %v52
    %v82 = vunpack.c.l.b16 %v53
    %v83 = vpack.c.b16 %v76, %v75
    %v84 = vpack.c.b16 %v78, %v77
    %v85 = vpack.c.b16 %v80, %v79
    %v86 = vpack.c.b16 %v82, %v81
    %vm87 = vcmask 64512
    %v89 = vsel %vm87, %v83, 0
    %v92 = vsel %vm87, %v84, 0
    %v95 = vsel %vm87, %v85, 0
    %v98 = vsel %vm87, %v86, 0
    %vm100 = vcmask 1043456
    %v102 = vsel %vm100, %v60, 0
    %104 = vmatprep.subr.bf16.mxu0 0
    %105 = vmatpush1.bf16.msra.mxu0 0
    %106 = vmatprep.subr.bf16.mxu0 0
    %107 = vmatpush1.bf16.msra.mxu0 0
    %108 = vmatprep.subr.bf16.mxu0 0
    %109 = vmatpush1.bf16.msra.mxu0 0
    %110 = vmatprep.subr.bf16.mxu0 0
    %111 = vmatpush1.bf16.msra.mxu0 0
    %112 = vmatprep.subr.bf16.mxu0 0
    %113 = vmatpush1.bf16.msra.mxu0 0
    %114 = vmatprep.subr.bf16.mxu0 0
    %115 = vmatpush1.bf16.msra.mxu0 0
    %116 = vmatprep.subr.bf16.mxu0 0
    %117 = vmatpush1.bf16.msra.mxu0 0
    %118 = vmatprep.subr.bf16.mxu0 0
    %119 = vmatpush1.bf16.msra.mxu0 %v102
    %120 = vmatprep.subr.bf16.mxu0 0
    %121 = vmatpush2.bf16.msra.mxu0 0
    %122 = vmatprep.subr.bf16.mxu0 0
    %123 = vmatpush2.bf16.msra.mxu0 0
    %124 = vmatprep.subr.bf16.mxu0 0
    %125 = vmatpush2.bf16.msra.mxu0 0
    %126 = vmatprep.subr.bf16.mxu0 0
    %127 = vmatpush2.bf16.msra.mxu0 0
    %128 = vmatprep.subr.bf16.mxu0 0
    %129 = vmatpush2.bf16.msra.mxu0 0
    %130 = vmatprep.subr.bf16.mxu0 0
    %131 = vmatpush2.bf16.msra.mxu0 0
    %132 = vmatprep.subr.bf16.mxu0 0
    %133 = vmatpush2.bf16.msra.mxu0 0
    %134 = vmatprep.subr.bf16.mxu0 0
    %135 = vmatpush2.bf16.msra.mxu0 0
    %136 = vmatprep.mubr.bf16.mxu0 0
    %137 = vmatmul.mubr.bf16.gmra.mxu0 %v89
    %v138 = vpop.f32.mrf.mxu0
    %v139 = vadd.f32 %v66, %v138
    %v140 = vpop.f32.mrf.mxu0
    %v141 = vpop.f32.mrf.mxu0
    %v142 = vadd.f32 %v66, %v141
    %v143 = vpop.f32.mrf.mxu0
    %144 = vmatprep.mubr.bf16.mxu0 0
    %145 = vmatmul.mubr.bf16.gmra.mxu0 %v92
    %v146 = vpop.f32.mrf.mxu0
    %v147 = vadd.f32 %v66, %v146
    %v148 = vpop.f32.mrf.mxu0
    %v149 = vpop.f32.mrf.mxu0
    %v150 = vadd.f32 %v66, %v149
    %v151 = vpop.f32.mrf.mxu0
    %152 = vmatprep.mubr.bf16.mxu0 0
    %153 = vmatmul.mubr.bf16.gmra.mxu0 %v95
    %v154 = vpop.f32.mrf.mxu0
    %v155 = vadd.f32 %v66, %v154
    %v156 = vpop.f32.mrf.mxu0
    %v157 = vpop.f32.mrf.mxu0
    %v158 = vadd.f32 %v66, %v157
    %v159 = vpop.f32.mrf.mxu0
    %160 = vmatprep.mubr.bf16.mxu0 0
    %161 = vmatmul.mubr.bf16.gmra.mxu0 %v98
    %v162 = vpop.f32.mrf.mxu0
    %v163 = vadd.f32 %v66, %v162
    %v164 = vpop.f32.mrf.mxu0
    %v165 = vpop.f32.mrf.mxu0
    %v166 = vadd.f32 %v66, %v165
    %v167 = vpop.f32.mrf.mxu0
    %168 = vdwg.mxu0
    %vm169 = vcmask 261120
    %v171 = vsel %vm169, 0, 0
    %173 = vmatprep.subr.bf16.mxu0 0
    %174 = vmatpush1.bf16.msra.mxu0 0
    %175 = vmatprep.subr.bf16.mxu0 0
    %176 = vmatpush1.bf16.msra.mxu0 0
    %177 = vmatprep.subr.bf16.mxu0 0
    %178 = vmatpush1.bf16.msra.mxu0 0
    %179 = vmatprep.subr.bf16.mxu0 0
    %180 = vmatpush1.bf16.msra.mxu0 0
    %181 = vmatprep.subr.bf16.mxu0 0
    %182 = vmatpush1.bf16.msra.mxu0 0
    %183 = vmatprep.subr.bf16.mxu0 0
    %184 = vmatpush1.bf16.msra.mxu0 0
    %185 = vmatprep.subr.bf16.mxu0 0
    %186 = vmatpush1.bf16.msra.mxu0 %v62
    %187 = vmatprep.subr.bf16.mxu0 0
    %188 = vmatpush1.bf16.msra.mxu0 %v61
    %189 = vmatprep.subr.bf16.mxu0 0
    %190 = vmatpush2.bf16.msra.mxu0 0
    %191 = vmatprep.subr.bf16.mxu0 0
    %192 = vmatpush2.bf16.msra.mxu0 0
    %193 = vmatprep.subr.bf16.mxu0 0
    %194 = vmatpush2.bf16.msra.mxu0 0
    %195 = vmatprep.subr.bf16.mxu0 0
    %196 = vmatpush2.bf16.msra.mxu0 0
    %197 = vmatprep.subr.bf16.mxu0 0
    %198 = vmatpush2.bf16.msra.mxu0 0
    %199 = vmatprep.subr.bf16.mxu0 0
    %200 = vmatpush2.bf16.msra.mxu0 0
    %201 = vmatprep.subr.bf16.mxu0 0
    %202 = vmatpush2.bf16.msra.mxu0 0
    %203 = vmatprep.subr.bf16.mxu0 0
    %204 = vmatpush2.bf16.msra.mxu0 0
    %205 = vmatprep.mubr.bf16.mxu0 0
    %206 = vmatmul.mubr.bf16.gmra.mxu0 %v171
    %v207 = vpop.f32.mrf.mxu0
    %v208 = vadd.f32 0.0, %v207
    %v209 = vpop.f32.mrf.mxu0
    %v210 = vpop.f32.mrf.mxu0
    %v211 = vpop.f32.mrf.mxu0
    %212 = vdwg.mxu0
    %v213 = vadd.f32 %v139, %v208
    %v214 = vxor.u32 %v213, 2147483648
    %v215 = vmul.f32 %v214, 1.442695
    %v216 = vpow.pop %v215
    %v217 = vadd.f32 %v216, 1.0
    %v218 = vrcp.pop %v217
    %v219 = vmul.f32 1.0, %v218
    %v220 = vtanh.pop %v213
    %v221 = vmul.f32 %v219, 0.0
    %223 = vrot.lane.b32.xlu0 %v220, 64
    %v224 = vpop.permute.xlu0 %223
    %v226 = vmul.f32 %v219, %v224
    %228 = vrot.lane.b32.xlu0 %v226, 32
    %v229 = vpop.permute.xlu0 %228
    %v231 = vadd.f32 %v221, %v229
    %v232 = vtanh.pop %v231
    %234 = vrot.lane.b32.xlu0 %v232, 64
    %v235 = vpop.permute.xlu0 %234
    %v237 = vmul.f32 %v219, %v235
    %v238 = vpack.c.bf16 %v237, %v237
    %240 = vrot.lane.b32.xlu0 %v238, 32
    %v241 = vpop.permute.xlu0 %240
    %v243 = vsel %vm169, %v241, 0
    %245 = vmatprep.subr.bf16.mxu0 0
    %246 = vmatpush1.bf16.msra.mxu0 0
    %247 = vmatprep.subr.bf16.mxu0 0
    %248 = vmatpush1.bf16.msra.mxu0 0
    %249 = vmatprep.subr.bf16.mxu0 0
    %250 = vmatpush1.bf16.msra.mxu0 0
    %251 = vmatprep.subr.bf16.mxu0 0
    %252 = vmatpush1.bf16.msra.mxu0 0
    %253 = vmatprep.subr.bf16.mxu0 0
    %254 = vmatpush1.bf16.msra.mxu0 0
    %255 = vmatprep.subr.bf16.mxu0 0
    %256 = vmatpush1.bf16.msra.mxu0 0
    %257 = vmatprep.subr.bf16.mxu0 0
    %258 = vmatpush1.bf16.msra.mxu0 %v62
    %259 = vmatprep.subr.bf16.mxu0 0
    %260 = vmatpush1.bf16.msra.mxu0 %v61
    %261 = vmatprep.subr.bf16.mxu0 0
    %262 = vmatpush2.bf16.msra.mxu0 0
    %263 = vmatprep.subr.bf16.mxu0 0
    %264 = vmatpush2.bf16.msra.mxu0 0
    %265 = vmatprep.subr.bf16.mxu0 0
    %266 = vmatpush2.bf16.msra.mxu0 0
    %267 = vmatprep.subr.bf16.mxu0 0
    %268 = vmatpush2.bf16.msra.mxu0 0
    %269 = vmatprep.subr.bf16.mxu0 0
    %270 = vmatpush2.bf16.msra.mxu0 0
    %271 = vmatprep.subr.bf16.mxu0 0
    %272 = vmatpush2.bf16.msra.mxu0 0
    %273 = vmatprep.subr.bf16.mxu0 0
    %274 = vmatpush2.bf16.msra.mxu0 0
    %275 = vmatprep.subr.bf16.mxu0 0
    %276 = vmatpush2.bf16.msra.mxu0 0
    %277 = vmatprep.mubr.bf16.mxu0 0
    %278 = vmatmul.mubr.bf16.gmra.mxu0 %v243
    %v279 = vpop.f32.mrf.mxu0
    %v280 = vadd.f32 0.0, %v279
    %v281 = vpop.f32.mrf.mxu0
    %v282 = vpop.f32.mrf.mxu0
    %v283 = vpop.f32.mrf.mxu0
    %284 = vdwg.mxu0
    %v285 = vadd.f32 %v142, %v280
    %v286 = vxor.u32 %v285, 2147483648
    %v287 = vmul.f32 %v286, 1.442695
    %v288 = vpow.pop %v287
    %v289 = vadd.f32 %v288, 1.0
    %v290 = vrcp.pop %v289
    %v291 = vmul.f32 1.0, %v290
    %v292 = vtanh.pop %v285
    %v293 = vmul.f32 %v291, %v231
    %295 = vrot.lane.b32.xlu0 %v292, 64
    %v296 = vpop.permute.xlu0 %295
    %v298 = vmul.f32 %v291, %v296
    %300 = vrot.lane.b32.xlu0 %v298, 32
    %v301 = vpop.permute.xlu0 %300
    %v303 = vadd.f32 %v293, %v301
    %v304 = vtanh.pop %v303
    %306 = vrot.lane.b32.xlu0 %v304, 64
    %v307 = vpop.permute.xlu0 %306
    %v309 = vmul.f32 %v291, %v307
    %v310 = vpack.c.bf16 %v309, %v309
    %312 = vrot.lane.b32.xlu0 %v310, 32
    %v313 = vpop.permute.xlu0 %312
    %v315 = vsel %vm169, %v313, 0
    %317 = vmatprep.subr.bf16.mxu0 0
    %318 = vmatpush1.bf16.msra.mxu0 0
    %319 = vmatprep.subr.bf16.mxu0 0
    %320 = vmatpush1.bf16.msra.mxu0 0
    %321 = vmatprep.subr.bf16.mxu0 0
    %322 = vmatpush1.bf16.msra.mxu0 0
    %323 = vmatprep.subr.bf16.mxu0 0
    %324 = vmatpush1.bf16.msra.mxu0 0
    %325 = vmatprep.subr.bf16.mxu0 0
    %326 = vmatpush1.bf16.msra.mxu0 0
    %327 = vmatprep.subr.bf16.mxu0 0
    %328 = vmatpush1.bf16.msra.mxu0 0
    %329 = vmatprep.subr.bf16.mxu0 0
    %330 = vmatpush1.bf16.msra.mxu0 %v62
    %331 = vmatprep.subr.bf16.mxu0 0
    %332 = vmatpush1.bf16.msra.mxu0 %v61
    %333 = vmatprep.subr.bf16.mxu0 0
    %334 = vmatpush2.bf16.msra.mxu0 0
    %335 = vmatprep.subr.bf16.mxu0 0
    %336 = vmatpush2.bf16.msra.mxu0 0
    %337 = vmatprep.subr.bf16.mxu0 0
    %338 = vmatpush2.bf16.msra.mxu0 0
    %339 = vmatprep.subr.bf16.mxu0 0
    %340 = vmatpush2.bf16.msra.mxu0 0
    %341 = vmatprep.subr.bf16.mxu0 0
    %342 = vmatpush2.bf16.msra.mxu0 0
    %343 = vmatprep.subr.bf16.mxu0 0
    %344 = vmatpush2.bf16.msra.mxu0 0
    %345 = vmatprep.subr.bf16.mxu0 0
    %346 = vmatpush2.bf16.msra.mxu0 0
    %347 = vmatprep.subr.bf16.mxu0 0
    %348 = vmatpush2.bf16.msra.mxu0 0
    %349 = vmatprep.mubr.bf16.mxu0 0
    %350 = vmatmul.mubr.bf16.gmra.mxu0 %v315
    %v351 = vpop.f32.mrf.mxu0
    %v352 = vadd.f32 0.0, %v351
    %v353 = vpop.f32.mrf.mxu0
    %v354 = vpop.f32.mrf.mxu0
    %v355 = vpop.f32.mrf.mxu0
    %356 = vdwg.mxu0
    %v357 = vadd.f32 %v147, %v352
    %v358 = vxor.u32 %v357, 2147483648
    %v359 = vmul.f32 %v358, 1.442695
    %v360 = vpow.pop %v359
    %v361 = vadd.f32 %v360, 1.0
    %v362 = vrcp.pop %v361
    %v363 = vmul.f32 1.0, %v362
    %v364 = vtanh.pop %v357
    %v365 = vmul.f32 %v363, %v303
    %367 = vrot.lane.b32.xlu0 %v364, 64
    %v368 = vpop.permute.xlu0 %367
    %v370 = vmul.f32 %v363, %v368
    %372 = vrot.lane.b32.xlu0 %v370, 32
    %v373 = vpop.permute.xlu0 %372
    %v375 = vadd.f32 %v365, %v373
    %v376 = vtanh.pop %v375
    %378 = vrot.lane.b32.xlu0 %v376, 64
    %v379 = vpop.permute.xlu0 %378
    %v381 = vmul.f32 %v363, %v379
    %v382 = vpack.c.bf16 %v381, %v381
    %384 = vrot.lane.b32.xlu0 %v382, 32
    %v385 = vpop.permute.xlu0 %384
    %v387 = vsel %vm169, %v385, 0
    %389 = vmatprep.subr.bf16.mxu0 0
    %390 = vmatpush1.bf16.msra.mxu0 0
    %391 = vmatprep.subr.bf16.mxu0 0
    %392 = vmatpush1.bf16.msra.mxu0 0
    %393 = vmatprep.subr.bf16.mxu0 0
    %394 = vmatpush1.bf16.msra.mxu0 0
    %395 = vmatprep.subr.bf16.mxu0 0
    %396 = vmatpush1.bf16.msra.mxu0 0
    %397 = vmatprep.subr.bf16.mxu0 0
    %398 = vmatpush1.bf16.msra.mxu0 0
    %399 = vmatprep.subr.bf16.mxu0 0
    %400 = vmatpush1.bf16.msra.mxu0 0
    %401 = vmatprep.subr.bf16.mxu0 0
    %402 = vmatpush1.bf16.msra.mxu0 %v62
    %403 = vmatprep.subr.bf16.mxu0 0
    %404 = vmatpush1.bf16.msra.mxu0 %v61
    %405 = vmatprep.subr.bf16.mxu0 0
    %406 = vmatpush2.bf16.msra.mxu0 0
    %407 = vmatprep.subr.bf16.mxu0 0
    %408 = vmatpush2.bf16.msra.mxu0 0
    %409 = vmatprep.subr.bf16.mxu0 0
    %410 = vmatpush2.bf16.msra.mxu0 0
    %411 = vmatprep.subr.bf16.mxu0 0
    %412 = vmatpush2.bf16.msra.mxu0 0
    %413 = vmatprep.subr.bf16.mxu0 0
    %414 = vmatpush2.bf16.msra.mxu0 0
    %415 = vmatprep.subr.bf16.mxu0 0
    %416 = vmatpush2.bf16.msra.mxu0 0
    %417 = vmatprep.subr.bf16.mxu0 0
    %418 = vmatpush2.bf16.msra.mxu0 0
    %419 = vmatprep.subr.bf16.mxu0 0
    %420 = vmatpush2.bf16.msra.mxu0 0
    %421 = vmatprep.mubr.bf16.mxu0 0
    %422 = vmatmul.mubr.bf16.gmra.mxu0 %v387
    %v423 = vpop.f32.mrf.mxu0
    %v424 = vadd.f32 0.0, %v423
    %v425 = vpop.f32.mrf.mxu0
    %v426 = vpop.f32.mrf.mxu0
    %v427 = vpop.f32.mrf.mxu0
    %428 = vdwg.mxu0
    %v429 = vadd.f32 %v150, %v424
    %v430 = vxor.u32 %v429, 2147483648
    %v431 = vmul.f32 %v430, 1.442695
    %v432 = vpow.pop %v431
    %v433 = vadd.f32 %v432, 1.0
    %v434 = vrcp.pop %v433
    %v435 = vmul.f32 1.0, %v434
    %v436 = vtanh.pop %v429
    %v437 = vmul.f32 %v435, %v375
    %439 = vrot.lane.b32.xlu0 %v436, 64
    %v440 = vpop.permute.xlu0 %439
    %v442 = vmul.f32 %v435, %v440
    %444 = vrot.lane.b32.xlu0 %v442, 32
    %v445 = vpop.permute.xlu0 %444
    %v447 = vadd.f32 %v437, %v445
    %v448 = vtanh.pop %v447
    %450 = vrot.lane.b32.xlu0 %v448, 64
    %v451 = vpop.permute.xlu0 %450
    %v453 = vmul.f32 %v435, %v451
    %v454 = vpack.c.bf16 %v453, %v453
    %456 = vrot.lane.b32.xlu0 %v454, 32
    %v457 = vpop.permute.xlu0 %456
    %v459 = vsel %vm169, %v457, 0
    %461 = vmatprep.subr.bf16.mxu0 0
    %462 = vmatpush1.bf16.msra.mxu0 0
    %463 = vmatprep.subr.bf16.mxu0 0
    %464 = vmatpush1.bf16.msra.mxu0 0
    %465 = vmatprep.subr.bf16.mxu0 0
    %466 = vmatpush1.bf16.msra.mxu0 0
    %467 = vmatprep.subr.bf16.mxu0 0
    %468 = vmatpush1.bf16.msra.mxu0 0
    %469 = vmatprep.subr.bf16.mxu0 0
    %470 = vmatpush1.bf16.msra.mxu0 0
    %471 = vmatprep.subr.bf16.mxu0 0
    %472 = vmatpush1.bf16.msra.mxu0 0
    %473 = vmatprep.subr.bf16.mxu0 0
    %474 = vmatpush1.bf16.msra.mxu0 %v62
    %475 = vmatprep.subr.bf16.mxu0 0
    %476 = vmatpush1.bf16.msra.mxu0 %v61
    %477 = vmatprep.subr.bf16.mxu0 0
    %478 = vmatpush2.bf16.msra.mxu0 0
    %479 = vmatprep.subr.bf16.mxu0 0
    %480 = vmatpush2.bf16.msra.mxu0 0
    %481 = vmatprep.subr.bf16.mxu0 0
    %482 = vmatpush2.bf16.msra.mxu0 0
    %483 = vmatprep.subr.bf16.mxu0 0
    %484 = vmatpush2.bf16.msra.mxu0 0
    %485 = vmatprep.subr.bf16.mxu0 0
    %486 = vmatpush2.bf16.msra.mxu0 0
    %487 = vmatprep.subr.bf16.mxu0 0
    %488 = vmatpush2.bf16.msra.mxu0 0
    %489 = vmatprep.subr.bf16.mxu0 0
    %490 = vmatpush2.bf16.msra.mxu0 0
    %491 = vmatprep.subr.bf16.mxu0 0
    %492 = vmatpush2.bf16.msra.mxu0 0
    %493 = vmatprep.mubr.bf16.mxu0 0
    %494 = vmatmul.mubr.bf16.gmra.mxu0 %v459
    %v495 = vpop.f32.mrf.mxu0
    %v496 = vadd.f32 0.0, %v495
    %v497 = vpop.f32.mrf.mxu0
    %v498 = vpop.f32.mrf.mxu0
    %v499 = vpop.f32.mrf.mxu0
    %500 = vdwg.mxu0
    %v501 = vadd.f32 %v155, %v496
    %v502 = vxor.u32 %v501, 2147483648
    %v503 = vmul.f32 %v502, 1.442695
    %v504 = vpow.pop %v503
    %v505 = vadd.f32 %v504, 1.0
    %v506 = vrcp.pop %v505
    %v507 = vmul.f32 1.0, %v506
    %v508 = vtanh.pop %v501
    %v509 = vmul.f32 %v507, %v447
    %511 = vrot.lane.b32.xlu0 %v508, 64
    %v512 = vpop.permute.xlu0 %511
    %v514 = vmul.f32 %v507, %v512
    %516 = vrot.lane.b32.xlu0 %v514, 32
    %v517 = vpop.permute.xlu0 %516
    %v519 = vadd.f32 %v509, %v517
    %v520 = vtanh.pop %v519
    %522 = vrot.lane.b32.xlu0 %v520, 64
    %v523 = vpop.permute.xlu0 %522
    %v525 = vmul.f32 %v507, %v523
    %v526 = vpack.c.bf16 %v525, %v525
    %528 = vrot.lane.b32.xlu0 %v526, 32
    %v529 = vpop.permute.xlu0 %528
    %v531 = vsel %vm169, %v529, 0
    %533 = vmatprep.subr.bf16.mxu0 0
    %534 = vmatpush1.bf16.msra.mxu0 0
    %535 = vmatprep.subr.bf16.mxu0 0
    %536 = vmatpush1.bf16.msra.mxu0 0
    %537 = vmatprep.subr.bf16.mxu0 0
    %538 = vmatpush1.bf16.msra.mxu0 0
    %539 = vmatprep.subr.bf16.mxu0 0
    %540 = vmatpush1.bf16.msra.mxu0 0
    %541 = vmatprep.subr.bf16.mxu0 0
    %542 = vmatpush1.bf16.msra.mxu0 0
    %543 = vmatprep.subr.bf16.mxu0 0
    %544 = vmatpush1.bf16.msra.mxu0 0
    %545 = vmatprep.subr.bf16.mxu0 0
    %546 = vmatpush1.bf16.msra.mxu0 %v62
    %547 = vmatprep.subr.bf16.mxu0 0
    %548 = vmatpush1.bf16.msra.mxu0 %v61
    %549 = vmatprep.subr.bf16.mxu0 0
    %550 = vmatpush2.bf16.msra.mxu0 0
    %551 = vmatprep.subr.bf16.mxu0 0
    %552 = vmatpush2.bf16.msra.mxu0 0
    %553 = vmatprep.subr.bf16.mxu0 0
    %554 = vmatpush2.bf16.msra.mxu0 0
    %555 = vmatprep.subr.bf16.mxu0 0
    %556 = vmatpush2.bf16.msra.mxu0 0
    %557 = vmatprep.subr.bf16.mxu0 0
    %558 = vmatpush2.bf16.msra.mxu0 0
    %559 = vmatprep.subr.bf16.mxu0 0
    %560 = vmatpush2.bf16.msra.mxu0 0
    %561 = vmatprep.subr.bf16.mxu0 0
    %562 = vmatpush2.bf16.msra.mxu0 0
    %563 = vmatprep.subr.bf16.mxu0 0
    %564 = vmatpush2.bf16.msra.mxu0 0
    %565 = vmatprep.mubr.bf16.mxu0 0
    %566 = vmatmul.mubr.bf16.gmra.mxu0 %v531
    %v567 = vpop.f32.mrf.mxu0
    %v568 = vadd.f32 0.0, %v567
    %v569 = vpop.f32.mrf.mxu0
    %v570 = vpop.f32.mrf.mxu0
    %v571 = vpop.f32.mrf.mxu0
    %572 = vdwg.mxu0
    %v573 = vadd.f32 %v158, %v568
    %v574 = vxor.u32 %v573, 2147483648
    %v575 = vmul.f32 %v574, 1.442695
    %v576 = vpow.pop %v575
    %v577 = vadd.f32 %v576, 1.0
    %v578 = vrcp.pop %v577
    %v579 = vmul.f32 1.0, %v578
    %v580 = vtanh.pop %v573
    %v581 = vmul.f32 %v579, %v519
    %583 = vrot.lane.b32.xlu0 %v580, 64
    %v584 = vpop.permute.xlu0 %583
    %v586 = vmul.f32 %v579, %v584
    %588 = vrot.lane.b32.xlu0 %v586, 32
    %v589 = vpop.permute.xlu0 %588
    %v591 = vadd.f32 %v581, %v589
    %v592 = vtanh.pop %v591
    %594 = vrot.lane.b32.xlu0 %v592, 64
    %v595 = vpop.permute.xlu0 %594
    %v597 = vmul.f32 %v579, %v595
    %v598 = vpack.c.bf16 %v597, %v597
    %600 = vrot.lane.b32.xlu0 %v598, 32
    %v601 = vpop.permute.xlu0 %600
    %v603 = vsel %vm169, %v601, 0
    %605 = vmatprep.subr.bf16.mxu0 0
    %606 = vmatpush1.bf16.msra.mxu0 0
    %607 = vmatprep.subr.bf16.mxu0 0
    %608 = vmatpush1.bf16.msra.mxu0 0
    %609 = vmatprep.subr.bf16.mxu0 0
    %610 = vmatpush1.bf16.msra.mxu0 0
    %611 = vmatprep.subr.bf16.mxu0 0
    %612 = vmatpush1.bf16.msra.mxu0 0
    %613 = vmatprep.subr.bf16.mxu0 0
    %614 = vmatpush1.bf16.msra.mxu0 0
    %615 = vmatprep.subr.bf16.mxu0 0
    %616 = vmatpush1.bf16.msra.mxu0 0
    %617 = vmatprep.subr.bf16.mxu0 0
    %618 = vmatpush1.bf16.msra.mxu0 %v62
    %619 = vmatprep.subr.bf16.mxu0 0
    %620 = vmatpush1.bf16.msra.mxu0 %v61
    %621 = vmatprep.subr.bf16.mxu0 0
    %622 = vmatpush2.bf16.msra.mxu0 0
    %623 = vmatprep.subr.bf16.mxu0 0
    %624 = vmatpush2.bf16.msra.mxu0 0
    %625 = vmatprep.subr.bf16.mxu0 0
    %626 = vmatpush2.bf16.msra.mxu0 0
    %627 = vmatprep.subr.bf16.mxu0 0
    %628 = vmatpush2.bf16.msra.mxu0 0
    %629 = vmatprep.subr.bf16.mxu0 0
    %630 = vmatpush2.bf16.msra.mxu0 0
    %631 = vmatprep.subr.bf16.mxu0 0
    %632 = vmatpush2.bf16.msra.mxu0 0
    %633 = vmatprep.subr.bf16.mxu0 0
    %634 = vmatpush2.bf16.msra.mxu0 0
    %635 = vmatprep.subr.bf16.mxu0 0
    %636 = vmatpush2.bf16.msra.mxu0 0
    %637 = vmatprep.mubr.bf16.mxu0 0
    %638 = vmatmul.mubr.bf16.gmra.mxu0 %v603
    %v639 = vpop.f32.mrf.mxu0
    %v640 = vadd.f32 0.0, %v639
    %v641 = vpop.f32.mrf.mxu0
    %v642 = vpop.f32.mrf.mxu0
    %v643 = vpop.f32.mrf.mxu0
    %644 = vdwg.mxu0
    %v645 = vadd.f32 %v163, %v640
    %v646 = vxor.u32 %v645, 2147483648
    %v647 = vmul.f32 %v646, 1.442695
    %v648 = vpow.pop %v647
    %v649 = vadd.f32 %v648, 1.0
    %v650 = vrcp.pop %v649
    %v651 = vmul.f32 1.0, %v650
    %v652 = vtanh.pop %v645
    %v653 = vmul.f32 %v651, %v591
    %655 = vrot.lane.b32.xlu0 %v652, 64
    %v656 = vpop.permute.xlu0 %655
    %v658 = vmul.f32 %v651, %v656
    %660 = vrot.lane.b32.xlu0 %v658, 32
    %v661 = vpop.permute.xlu0 %660
    %v663 = vadd.f32 %v653, %v661
    %v664 = vtanh.pop %v663
    %666 = vrot.lane.b32.xlu0 %v664, 64
    %v667 = vpop.permute.xlu0 %666
    %v669 = vmul.f32 %v651, %v667
    %v670 = vpack.c.bf16 %v669, %v669
    %672 = vrot.lane.b32.xlu0 %v670, 32
    %v673 = vpop.permute.xlu0 %672
    %v675 = vsel %vm169, %v673, 0
    %677 = vmatprep.subr.bf16.mxu0 0
    %678 = vmatpush1.bf16.msra.mxu0 0
    %679 = vmatprep.subr.bf16.mxu0 0
    %680 = vmatpush1.bf16.msra.mxu0 0
    %681 = vmatprep.subr.bf16.mxu0 0
    %682 = vmatpush1.bf16.msra.mxu0 0
    %683 = vmatprep.subr.bf16.mxu0 0
    %684 = vmatpush1.bf16.msra.mxu0 0
    %685 = vmatprep.subr.bf16.mxu0 0
    %686 = vmatpush1.bf16.msra.mxu0 0
    %687 = vmatprep.subr.bf16.mxu0 0
    %688 = vmatpush1.bf16.msra.mxu0 0
    %689 = vmatprep.subr.bf16.mxu0 0
    %690 = vmatpush1.bf16.msra.mxu0 %v62
    %691 = vmatprep.subr.bf16.mxu0 0
    %692 = vmatpush1.bf16.msra.mxu0 %v61
    %693 = vmatprep.subr.bf16.mxu0 0
    %694 = vmatpush2.bf16.msra.mxu0 0
    %695 = vmatprep.subr.bf16.mxu0 0
    %696 = vmatpush2.bf16.msra.mxu0 0
    %697 = vmatprep.subr.bf16.mxu0 0
    %698 = vmatpush2.bf16.msra.mxu0 0
    %699 = vmatprep.subr.bf16.mxu0 0
    %700 = vmatpush2.bf16.msra.mxu0 0
    %701 = vmatprep.subr.bf16.mxu0 0
    %702 = vmatpush2.bf16.msra.mxu0 0
    %703 = vmatprep.subr.bf16.mxu0 0
    %704 = vmatpush2.bf16.msra.mxu0 0
    %705 = vmatprep.subr.bf16.mxu0 0
    %706 = vmatpush2.bf16.msra.mxu0 0
    %707 = vmatprep.subr.bf16.mxu0 0
    %708 = vmatpush2.bf16.msra.mxu0 0
    %709 = vmatprep.mubr.bf16.mxu0 0
    %710 = vmatmul.mubr.bf16.gmra.mxu0 %v675
    %v711 = vpop.f32.mrf.mxu0
    %v712 = vadd.f32 0.0, %v711
    %v713 = vpop.f32.mrf.mxu0
    %v714 = vpop.f32.mrf.mxu0
    %v715 = vpop.f32.mrf.mxu0
    %716 = vdwg.mxu0
    %v717 = vadd.f32 %v166, %v712
    %v718 = vxor.u32 %v717, 2147483648
    %v719 = vmul.f32 %v718, 1.442695
    %v720 = vpow.pop %v719
    %v721 = vadd.f32 %v720, 1.0
    %v722 = vrcp.pop %v721
    %v723 = vmul.f32 1.0, %v722
    %v724 = vtanh.pop %v717
    %v725 = vmul.f32 %v723, %v663
    %727 = vrot.lane.b32.xlu0 %v724, 64
    %v728 = vpop.permute.xlu0 %727
    %v730 = vmul.f32 %v723, %v728
    %732 = vrot.lane.b32.xlu0 %v730, 32
    %v733 = vpop.permute.xlu0 %732
    %v735 = vadd.f32 %v725, %v733
    %v736 = vtanh.pop %v735
    %738 = vrot.lane.b32.xlu0 %v736, 64
    %v739 = vpop.permute.xlu0 %738
    %v741 = vmul.f32 %v723, %v739
    %v742 = vpack.c.bf16 %v309, %v237
    %v743 = vpack.c.bf16 %v453, %v381
    %v744 = vpack.c.bf16 %v597, %v525
    %v745 = vpack.c.bf16 %v741, %v669
    %v746 = vld [vmem:[%s2] sm:$0xff]
    %v747 = vld [vmem:[%s2 + $0x8] sm:$0xff]
    %v748 = vld [vmem:[%s2 + $0x10] sm:$0xff]
    %v749 = vld [vmem:[%s2 + $0x18] sm:$0xff]
    %v750 = vld [vmem:[%s2 + $0x20] sm:$0xff]
    %v751 = vld [vmem:[%s2 + $0x28] sm:$0xff]
    %v752 = vld [vmem:[%s2 + $0x30] sm:$0xff]
    %v753 = vld [vmem:[%s2 + $0x38] sm:$0xff]
    %v754 = vld [vmem:[%s2 + $0x40] sm:$0x1]
    %v755 = vpack.c.bf16 %v747, %v746
    %v756 = vpack.c.bf16 %v749, %v748
    %v757 = vpack.c.bf16 %v751, %v750
    %v758 = vpack.c.bf16 %v753, %v752
    %v759 = vlaneseq
    %v760 = vshrl.u32 %v759, 7
    %v761 = vsub.s32 0, %v760
    %v762 = vrot.slane %v754, %v761
    %767 = vrot.lane.b32.xlu0 %v742, 32
    %v768 = vpop.permute.xlu0 %767
    %769 = vrot.lane.b32.xlu0 %v743, 32
    %v770 = vpop.permute.xlu0 %769
    %771 = vrot.lane.b32.xlu0 %v744, 32
    %v772 = vpop.permute.xlu0 %771
    %773 = vrot.lane.b32.xlu0 %v745, 32
    %v774 = vpop.permute.xlu0 %773
    %v776 = vsel %vm169, %v768, 0
    %v779 = vsel %vm169, %v770, 0
    %v782 = vsel %vm169, %v772, 0
    %v785 = vsel %vm169, %v774, 0
    %787 = vmatprep.subr.bf16.mxu0 0
    %788 = vmatpush1.bf16.msra.mxu0 0
    %789 = vmatprep.subr.bf16.mxu0 0
    %790 = vmatpush1.bf16.msra.mxu0 0
    %791 = vmatprep.subr.bf16.mxu0 0
    %792 = vmatpush1.bf16.msra.mxu0 0
    %793 = vmatprep.subr.bf16.mxu0 0
    %794 = vmatpush1.bf16.msra.mxu0 0
    %795 = vmatprep.subr.bf16.mxu0 0
    %796 = vmatpush1.bf16.msra.mxu0 0
    %797 = vmatprep.subr.bf16.mxu0 0
    %798 = vmatpush1.bf16.msra.mxu0 0
    %799 = vmatprep.subr.bf16.mxu0 0
    %800 = vmatpush1.bf16.msra.mxu0 %v756
    %801 = vmatprep.subr.bf16.mxu0 0
    %802 = vmatpush1.bf16.msra.mxu0 %v755
    %803 = vmatprep.subr.bf16.mxu0 0
    %804 = vmatpush2.bf16.msra.mxu0 0
    %805 = vmatprep.subr.bf16.mxu0 0
    %806 = vmatpush2.bf16.msra.mxu0 0
    %807 = vmatprep.subr.bf16.mxu0 0
    %808 = vmatpush2.bf16.msra.mxu0 0
    %809 = vmatprep.subr.bf16.mxu0 0
    %810 = vmatpush2.bf16.msra.mxu0 0
    %811 = vmatprep.subr.bf16.mxu0 0
    %812 = vmatpush2.bf16.msra.mxu0 0
    %813 = vmatprep.subr.bf16.mxu0 0
    %814 = vmatpush2.bf16.msra.mxu0 0
    %815 = vmatprep.subr.bf16.mxu0 0
    %816 = vmatpush2.bf16.msra.mxu0 0
    %817 = vmatprep.subr.bf16.mxu0 0
    %818 = vmatpush2.bf16.msra.mxu0 0
    %819 = vmatprep.mubr.bf16.mxu0 0
    %820 = vmatmul.mubr.bf16.gmra.mxu0 %v776
    %v821 = vpop.f32.mrf.mxu0
    %v822 = vadd.f32 %v762, %v821
    %v823 = vpop.f32.mrf.mxu0
    %v824 = vpop.f32.mrf.mxu0
    %v825 = vadd.f32 %v762, %v824
    %v826 = vpop.f32.mrf.mxu0
    %827 = vmatprep.mubr.bf16.mxu0 0
    %828 = vmatmul.mubr.bf16.gmra.mxu0 %v779
    %v829 = vpop.f32.mrf.mxu0
    %v830 = vadd.f32 %v762, %v829
    %v831 = vpop.f32.mrf.mxu0
    %v832 = vpop.f32.mrf.mxu0
    %v833 = vadd.f32 %v762, %v832
    %v834 = vpop.f32.mrf.mxu0
    %835 = vmatprep.mubr.bf16.mxu0 0
    %836 = vmatmul.mubr.bf16.gmra.mxu0 %v782
    %v837 = vpop.f32.mrf.mxu0
    %v838 = vadd.f32 %v762, %v837
    %v839 = vpop.f32.mrf.mxu0
    %v840 = vpop.f32.mrf.mxu0
    %v841 = vadd.f32 %v762, %v840
    %v842 = vpop.f32.mrf.mxu0
    %843 = vmatprep.mubr.bf16.mxu0 0
    %844 = vmatmul.mubr.bf16.gmra.mxu0 %v785
    %v845 = vpop.f32.mrf.mxu0
    %v846 = vadd.f32 %v762, %v845
    %v847 = vpop.f32.mrf.mxu0
    %v848 = vpop.f32.mrf.mxu0
    %v849 = vadd.f32 %v762, %v848
    %v850 = vpop.f32.mrf.mxu0
    %851 = vdwg.mxu0
    %852 = vmatprep.subr.bf16.mxu0 0
    %853 = vmatpush1.bf16.msra.mxu0 0
    %854 = vmatprep.subr.bf16.mxu0 0
    %855 = vmatpush1.bf16.msra.mxu0 0
    %856 = vmatprep.subr.bf16.mxu0 0
    %857 = vmatpush1.bf16.msra.mxu0 0
    %858 = vmatprep.subr.bf16.mxu0 0
    %859 = vmatpush1.bf16.msra.mxu0 0
    %860 = vmatprep.subr.bf16.mxu0 0
    %861 = vmatpush1.bf16.msra.mxu0 0
    %862 = vmatprep.subr.bf16.mxu0 0
    %863 = vmatpush1.bf16.msra.mxu0 0
    %864 = vmatprep.subr.bf16.mxu0 0
    %865 = vmatpush1.bf16.msra.mxu0 %v758
    %866 = vmatprep.subr.bf16.mxu0 0
    %867 = vmatpush1.bf16.msra.mxu0 %v757
    %868 = vmatprep.subr.bf16.mxu0 0
    %869 = vmatpush2.bf16.msra.mxu0 0
    %870 = vmatprep.subr.bf16.mxu0 0
    %871 = vmatpush2.bf16.msra.mxu0 0
    %872 = vmatprep.subr.bf16.mxu0 0
    %873 = vmatpush2.bf16.msra.mxu0 0
    %874 = vmatprep.subr.bf16.mxu0 0
    %875 = vmatpush2.bf16.msra.mxu0 0
    %876 = vmatprep.subr.bf16.mxu0 0
    %877 = vmatpush2.bf16.msra.mxu0 0
    %878 = vmatprep.subr.bf16.mxu0 0
    %879 = vmatpush2.bf16.msra.mxu0 0
    %880 = vmatprep.subr.bf16.mxu0 0
    %881 = vmatpush2.bf16.msra.mxu0 0
    %882 = vmatprep.subr.bf16.mxu0 0
    %883 = vmatpush2.bf16.msra.mxu0 0
    %884 = vmatprep.mubr.bf16.mxu0 0
    %885 = vmatmul.mubr.bf16.gmra.mxu0 %v171
    %v886 = vpop.f32.mrf.mxu0
    %v887 = vadd.f32 0.0, %v886
    %v888 = vpop.f32.mrf.mxu0
    %v889 = vpop.f32.mrf.mxu0
    %v890 = vpop.f32.mrf.mxu0
    %891 = vdwg.mxu0
    %v892 = vadd.f32 %v822, %v887
    %v893 = vxor.u32 %v892, 2147483648
    %v894 = vmul.f32 %v893, 1.442695
    %v895 = vpow.pop %v894
    %v896 = vadd.f32 %v895, 1.0
    %v897 = vrcp.pop %v896
    %v898 = vmul.f32 1.0, %v897
    %v899 = vtanh.pop %v892
    %v900 = vmul.f32 %v898, 0.0
    %902 = vrot.lane.b32.xlu0 %v899, 64
    %v903 = vpop.permute.xlu0 %902
    %v905 = vmul.f32 %v898, %v903
    %907 = vrot.lane.b32.xlu0 %v905, 32
    %v908 = vpop.permute.xlu0 %907
    %v910 = vadd.f32 %v900, %v908
    %v911 = vtanh.pop %v910
    %913 = vrot.lane.b32.xlu0 %v911, 64
    %v914 = vpop.permute.xlu0 %913
    %v916 = vmul.f32 %v898, %v914
    %v917 = vpack.c.bf16 %v916, %v916
    %919 = vrot.lane.b32.xlu0 %v917, 32
    %v920 = vpop.permute.xlu0 %919
    %v922 = vsel %vm169, %v920, 0
    %924 = vmatprep.subr.bf16.mxu0 0
    %925 = vmatpush1.bf16.msra.mxu0 0
    %926 = vmatprep.subr.bf16.mxu0 0
    %927 = vmatpush1.bf16.msra.mxu0 0
    %928 = vmatprep.subr.bf16.mxu0 0
    %929 = vmatpush1.bf16.msra.mxu0 0
    %930 = vmatprep.subr.bf16.mxu0 0
    %931 = vmatpush1.bf16.msra.mxu0 0
    %932 = vmatprep.subr.bf16.mxu0 0
    %933 = vmatpush1.bf16.msra.mxu0 0
    %934 = vmatprep.subr.bf16.mxu0 0
    %935 = vmatpush1.bf16.msra.mxu0 0
    %936 = vmatprep.subr.bf16.mxu0 0
    %937 = vmatpush1.bf16.msra.mxu0 %v758
    %938 = vmatprep.subr.bf16.mxu0 0
    %939 = vmatpush1.bf16.msra.mxu0 %v757
    %940 = vmatprep.subr.bf16.mxu0 0
    %941 = vmatpush2.bf16.msra.mxu0 0
    %942 = vmatprep.subr.bf16.mxu0 0
    %943 = vmatpush2.bf16.msra.mxu0 0
    %944 = vmatprep.subr.bf16.mxu0 0
    %945 = vmatpush2.bf16.msra.mxu0 0
    %946 = vmatprep.subr.bf16.mxu0 0
    %947 = vmatpush2.bf16.msra.mxu0 0
    %948 = vmatprep.subr.bf16.mxu0 0
    %949 = vmatpush2.bf16.msra.mxu0 0
    %950 = vmatprep.subr.bf16.mxu0 0
    %951 = vmatpush2.bf16.msra.mxu0 0
    %952 = vmatprep.subr.bf16.mxu0 0
    %953 = vmatpush2.bf16.msra.mxu0 0
    %954 = vmatprep.subr.bf16.mxu0 0
    %955 = vmatpush2.bf16.msra.mxu0 0
    %956 = vmatprep.mubr.bf16.mxu0 0
    %957 = vmatmul.mubr.bf16.gmra.mxu0 %v922
    %v958 = vpop.f32.mrf.mxu0
    %v959 = vadd.f32 0.0, %v958
    %v960 = vpop.f32.mrf.mxu0
    %v961 = vpop.f32.mrf.mxu0
    %v962 = vpop.f32.mrf.mxu0
    %963 = vdwg.mxu0
    %v964 = vadd.f32 %v825, %v959
    %v965 = vxor.u32 %v964, 2147483648
    %v966 = vmul.f32 %v965, 1.442695
    %v967 = vpow.pop %v966
    %v968 = vadd.f32 %v967, 1.0
    %v969 = vrcp.pop %v968
    %v970 = vmul.f32 1.0, %v969
    %v971 = vtanh.pop %v964
    %v972 = vmul.f32 %v970, %v910
    %974 = vrot.lane.b32.xlu0 %v971, 64
    %v975 = vpop.permute.xlu0 %974
    %v977 = vmul.f32 %v970, %v975
    %979 = vrot.lane.b32.xlu0 %v977, 32
    %v980 = vpop.permute.xlu0 %979
    %v982 = vadd.f32 %v972, %v980
    %v983 = vtanh.pop %v982
    %985 = vrot.lane.b32.xlu0 %v983, 64
    %v986 = vpop.permute.xlu0 %985
    %v988 = vmul.f32 %v970, %v986
    %v989 = vpack.c.bf16 %v988, %v988
    %991 = vrot.lane.b32.xlu0 %v989, 32
    %v992 = vpop.permute.xlu0 %991
    %v994 = vsel %vm169, %v992, 0
    %996 = vmatprep.subr.bf16.mxu0 0
    %997 = vmatpush1.bf16.msra.mxu0 0
    %998 = vmatprep.subr.bf16.mxu0 0
    %999 = vmatpush1.bf16.msra.mxu0 0
    %1000 = vmatprep.subr.bf16.mxu0 0
    %1001 = vmatpush1.bf16.msra.mxu0 0
    %1002 = vmatprep.subr.bf16.mxu0 0
    %1003 = vmatpush1.bf16.msra.mxu0 0
    %1004 = vmatprep.subr.bf16.mxu0 0
    %1005 = vmatpush1.bf16.msra.mxu0 0
    %1006 = vmatprep.subr.bf16.mxu0 0
    %1007 = vmatpush1.bf16.msra.mxu0 0
    %1008 = vmatprep.subr.bf16.mxu0 0
    %1009 = vmatpush1.bf16.msra.mxu0 %v758
    %1010 = vmatprep.subr.bf16.mxu0 0
    %1011 = vmatpush1.bf16.msra.mxu0 %v757
    %1012 = vmatprep.subr.bf16.mxu0 0
    %1013 = vmatpush2.bf16.msra.mxu0 0
    %1014 = vmatprep.subr.bf16.mxu0 0
    %1015 = vmatpush2.bf16.msra.mxu0 0
    %1016 = vmatprep.subr.bf16.mxu0 0
    %1017 = vmatpush2.bf16.msra.mxu0 0
    %1018 = vmatprep.subr.bf16.mxu0 0
    %1019 = vmatpush2.bf16.msra.mxu0 0
    %1020 = vmatprep.subr.bf16.mxu0 0
    %1021 = vmatpush2.bf16.msra.mxu0 0
    %1022 = vmatprep.subr.bf16.mxu0 0
    %1023 = vmatpush2.bf16.msra.mxu0 0
    %1024 = vmatprep.subr.bf16.mxu0 0
    %1025 = vmatpush2.bf16.msra.mxu0 0
    %1026 = vmatprep.subr.bf16.mxu0 0
    %1027 = vmatpush2.bf16.msra.mxu0 0
    %1028 = vmatprep.mubr.bf16.mxu0 0
    %1029 = vmatmul.mubr.bf16.gmra.mxu0 %v994
    %v1030 = vpop.f32.mrf.mxu0
    %v1031 = vadd.f32 0.0, %v1030
    %v1032 = vpop.f32.mrf.mxu0
    %v1033 = vpop.f32.mrf.mxu0
    %v1034 = vpop.f32.mrf.mxu0
    %1035 = vdwg.mxu0
    %v1036 = vadd.f32 %v830, %v1031
    %v1037 = vxor.u32 %v1036, 2147483648
    %v1038 = vmul.f32 %v1037, 1.442695
    %v1039 = vpow.pop %v1038
    %v1040 = vadd.f32 %v1039, 1.0
    %v1041 = vrcp.pop %v1040
    %v1042 = vmul.f32 1.0, %v1041
    %v1043 = vtanh.pop %v1036
    %v1044 = vmul.f32 %v1042, %v982
    %1046 = vrot.lane.b32.xlu0 %v1043, 64
    %v1047 = vpop.permute.xlu0 %1046
    %v1049 = vmul.f32 %v1042, %v1047
    %1051 = vrot.lane.b32.xlu0 %v1049, 32
    %v1052 = vpop.permute.xlu0 %1051
    %v1054 = vadd.f32 %v1044, %v1052
    %v1055 = vtanh.pop %v1054
    %1057 = vrot.lane.b32.xlu0 %v1055, 64
    %v1058 = vpop.permute.xlu0 %1057
    %v1060 = vmul.f32 %v1042, %v1058
    %v1061 = vpack.c.bf16 %v1060, %v1060
    %1063 = vrot.lane.b32.xlu0 %v1061, 32
    %v1064 = vpop.permute.xlu0 %1063
    %v1066 = vsel %vm169, %v1064, 0
    %1068 = vmatprep.subr.bf16.mxu0 0
    %1069 = vmatpush1.bf16.msra.mxu0 0
    %1070 = vmatprep.subr.bf16.mxu0 0
    %1071 = vmatpush1.bf16.msra.mxu0 0
    %1072 = vmatprep.subr.bf16.mxu0 0
    %1073 = vmatpush1.bf16.msra.mxu0 0
    %1074 = vmatprep.subr.bf16.mxu0 0
    %1075 = vmatpush1.bf16.msra.mxu0 0
    %1076 = vmatprep.subr.bf16.mxu0 0
    %1077 = vmatpush1.bf16.msra.mxu0 0
    %1078 = vmatprep.subr.bf16.mxu0 0
    %1079 = vmatpush1.bf16.msra.mxu0 0
    %1080 = vmatprep.subr.bf16.mxu0 0
    %1081 = vmatpush1.bf16.msra.mxu0 %v758
    %1082 = vmatprep.subr.bf16.mxu0 0
    %1083 = vmatpush1.bf16.msra.mxu0 %v757
    %1084 = vmatprep.subr.bf16.mxu0 0
    %1085 = vmatpush2.bf16.msra.mxu0 0
    %1086 = vmatprep.subr.bf16.mxu0 0
    %1087 = vmatpush2.bf16.msra.mxu0 0
    %1088 = vmatprep.subr.bf16.mxu0 0
    %1089 = vmatpush2.bf16.msra.mxu0 0
    %1090 = vmatprep.subr.bf16.mxu0 0
    %1091 = vmatpush2.bf16.msra.mxu0 0
    %1092 = vmatprep.subr.bf16.mxu0 0
    %1093 = vmatpush2.bf16.msra.mxu0 0
    %1094 = vmatprep.subr.bf16.mxu0 0
    %1095 = vmatpush2.bf16.msra.mxu0 0
    %1096 = vmatprep.subr.bf16.mxu0 0
    %1097 = vmatpush2.bf16.msra.mxu0 0
    %1098 = vmatprep.subr.bf16.mxu0 0
    %1099 = vmatpush2.bf16.msra.mxu0 0
    %1100 = vmatprep.mubr.bf16.mxu0 0
    %1101 = vmatmul.mubr.bf16.gmra.mxu0 %v1066
    %v1102 = vpop.f32.mrf.mxu0
    %v1103 = vadd.f32 0.0, %v1102
    %v1104 = vpop.f32.mrf.mxu0
    %v1105 = vpop.f32.mrf.mxu0
    %v1106 = vpop.f32.mrf.mxu0
    %1107 = vdwg.mxu0
    %v1108 = vadd.f32 %v833, %v1103
    %v1109 = vxor.u32 %v1108, 2147483648
    %v1110 = vmul.f32 %v1109, 1.442695
    %v1111 = vpow.pop %v1110
    %v1112 = vadd.f32 %v1111, 1.0
    %v1113 = vrcp.pop %v1112
    %v1114 = vmul.f32 1.0, %v1113
    %v1115 = vtanh.pop %v1108
    %v1116 = vmul.f32 %v1114, %v1054
    %1118 = vrot.lane.b32.xlu0 %v1115, 64
    %v1119 = vpop.permute.xlu0 %1118
    %v1121 = vmul.f32 %v1114, %v1119
    %1123 = vrot.lane.b32.xlu0 %v1121, 32
    %v1124 = vpop.permute.xlu0 %1123
    %v1126 = vadd.f32 %v1116, %v1124
    %v1127 = vtanh.pop %v1126
    %1129 = vrot.lane.b32.xlu0 %v1127, 64
    %v1130 = vpop.permute.xlu0 %1129
    %v1132 = vmul.f32 %v1114, %v1130
    %v1133 = vpack.c.bf16 %v1132, %v1132
    %1135 = vrot.lane.b32.xlu0 %v1133, 32
    %v1136 = vpop.permute.xlu0 %1135
    %v1138 = vsel %vm169, %v1136, 0
    %1140 = vmatprep.subr.bf16.mxu0 0
    %1141 = vmatpush1.bf16.msra.mxu0 0
    %1142 = vmatprep.subr.bf16.mxu0 0
    %1143 = vmatpush1.bf16.msra.mxu0 0
    %1144 = vmatprep.subr.bf16.mxu0 0
    %1145 = vmatpush1.bf16.msra.mxu0 0
    %1146 = vmatprep.subr.bf16.mxu0 0
    %1147 = vmatpush1.bf16.msra.mxu0 0
    %1148 = vmatprep.subr.bf16.mxu0 0
    %1149 = vmatpush1.bf16.msra.mxu0 0
    %1150 = vmatprep.subr.bf16.mxu0 0
    %1151 = vmatpush1.bf16.msra.mxu0 0
    %1152 = vmatprep.subr.bf16.mxu0 0
    %1153 = vmatpush1.bf16.msra.mxu0 %v758
    %1154 = vmatprep.subr.bf16.mxu0 0
    %1155 = vmatpush1.bf16.msra.mxu0 %v757
    %1156 = vmatprep.subr.bf16.mxu0 0
    %1157 = vmatpush2.bf16.msra.mxu0 0
    %1158 = vmatprep.subr.bf16.mxu0 0
    %1159 = vmatpush2.bf16.msra.mxu0 0
    %1160 = vmatprep.subr.bf16.mxu0 0
    %1161 = vmatpush2.bf16.msra.mxu0 0
    %1162 = vmatprep.subr.bf16.mxu0 0
    %1163 = vmatpush2.bf16.msra.mxu0 0
    %1164 = vmatprep.subr.bf16.mxu0 0
    %1165 = vmatpush2.bf16.msra.mxu0 0
    %1166 = vmatprep.subr.bf16.mxu0 0
    %1167 = vmatpush2.bf16.msra.mxu0 0
    %1168 = vmatprep.subr.bf16.mxu0 0
    %1169 = vmatpush2.bf16.msra.mxu0 0
    %1170 = vmatprep.subr.bf16.mxu0 0
    %1171 = vmatpush2.bf16.msra.mxu0 0
    %1172 = vmatprep.mubr.bf16.mxu0 0
    %1173 = vmatmul.mubr.bf16.gmra.mxu0 %v1138
    %v1174 = vpop.f32.mrf.mxu0
    %v1175 = vadd.f32 0.0, %v1174
    %v1176 = vpop.f32.mrf.mxu0
    %v1177 = vpop.f32.mrf.mxu0
    %v1178 = vpop.f32.mrf.mxu0
    %1179 = vdwg.mxu0
    %v1180 = vadd.f32 %v838, %v1175
    %v1181 = vxor.u32 %v1180, 2147483648
    %v1182 = vmul.f32 %v1181, 1.442695
    %v1183 = vpow.pop %v1182
    %v1184 = vadd.f32 %v1183, 1.0
    %v1185 = vrcp.pop %v1184
    %v1186 = vmul.f32 1.0, %v1185
    %v1187 = vtanh.pop %v1180
    %v1188 = vmul.f32 %v1186, %v1126
    %1190 = vrot.lane.b32.xlu0 %v1187, 64
    %v1191 = vpop.permute.xlu0 %1190
    %v1193 = vmul.f32 %v1186, %v1191
    %1195 = vrot.lane.b32.xlu0 %v1193, 32
    %v1196 = vpop.permute.xlu0 %1195
    %v1198 = vadd.f32 %v1188, %v1196
    %v1199 = vtanh.pop %v1198
    %1201 = vrot.lane.b32.xlu0 %v1199, 64
    %v1202 = vpop.permute.xlu0 %1201
    %v1204 = vmul.f32 %v1186, %v1202
    %v1205 = vpack.c.bf16 %v1204, %v1204
    %1207 = vrot.lane.b32.xlu0 %v1205, 32
    %v1208 = vpop.permute.xlu0 %1207
    %v1210 = vsel %vm169, %v1208, 0
    %1212 = vmatprep.subr.bf16.mxu0 0
    %1213 = vmatpush1.bf16.msra.mxu0 0
    %1214 = vmatprep.subr.bf16.mxu0 0
    %1215 = vmatpush1.bf16.msra.mxu0 0
    %1216 = vmatprep.subr.bf16.mxu0 0
    %1217 = vmatpush1.bf16.msra.mxu0 0
    %1218 = vmatprep.subr.bf16.mxu0 0
    %1219 = vmatpush1.bf16.msra.mxu0 0
    %1220 = vmatprep.subr.bf16.mxu0 0
    %1221 = vmatpush1.bf16.msra.mxu0 0
    %1222 = vmatprep.subr.bf16.mxu0 0
    %1223 = vmatpush1.bf16.msra.mxu0 0
    %1224 = vmatprep.subr.bf16.mxu0 0
    %1225 = vmatpush1.bf16.msra.mxu0 %v758
    %1226 = vmatprep.subr.bf16.mxu0 0
    %1227 = vmatpush1.bf16.msra.mxu0 %v757
    %1228 = vmatprep.subr.bf16.mxu0 0
    %1229 = vmatpush2.bf16.msra.mxu0 0
    %1230 = vmatprep.subr.bf16.mxu0 0
    %1231 = vmatpush2.bf16.msra.mxu0 0
    %1232 = vmatprep.subr.bf16.mxu0 0
    %1233 = vmatpush2.bf16.msra.mxu0 0
    %1234 = vmatprep.subr.bf16.mxu0 0
    %1235 = vmatpush2.bf16.msra.mxu0 0
    %1236 = vmatprep.subr.bf16.mxu0 0
    %1237 = vmatpush2.bf16.msra.mxu0 0
    %1238 = vmatprep.subr.bf16.mxu0 0
    %1239 = vmatpush2.bf16.msra.mxu0 0
    %1240 = vmatprep.subr.bf16.mxu0 0
    %1241 = vmatpush2.bf16.msra.mxu0 0
    %1242 = vmatprep.subr.bf16.mxu0 0
    %1243 = vmatpush2.bf16.msra.mxu0 0
    %1244 = vmatprep.mubr.bf16.mxu0 0
    %1245 = vmatmul.mubr.bf16.gmra.mxu0 %v1210
    %v1246 = vpop.f32.mrf.mxu0
    %v1247 = vadd.f32 0.0, %v1246
    %v1248 = vpop.f32.mrf.mxu0
    %v1249 = vpop.f32.mrf.mxu0
    %v1250 = vpop.f32.mrf.mxu0
    %1251 = vdwg.mxu0
    %v1252 = vadd.f32 %v841, %v1247
    %v1253 = vxor.u32 %v1252, 2147483648
    %v1254 = vmul.f32 %v1253, 1.442695
    %v1255 = vpow.pop %v1254
    %v1256 = vadd.f32 %v1255, 1.0
    %v1257 = vrcp.pop %v1256
    %v1258 = vmul.f32 1.0, %v1257
    %v1259 = vtanh.pop %v1252
    %v1260 = vmul.f32 %v1258, %v1198
    %1262 = vrot.lane.b32.xlu0 %v1259, 64
    %v1263 = vpop.permute.xlu0 %1262
    %v1265 = vmul.f32 %v1258, %v1263
    %1267 = vrot.lane.b32.xlu0 %v1265, 32
    %v1268 = vpop.permute.xlu0 %1267
    %v1270 = vadd.f32 %v1260, %v1268
    %v1271 = vtanh.pop %v1270
    %1273 = vrot.lane.b32.xlu0 %v1271, 64
    %v1274 = vpop.permute.xlu0 %1273
    %v1276 = vmul.f32 %v1258, %v1274
    %v1277 = vpack.c.bf16 %v1276, %v1276
    %1279 = vrot.lane.b32.xlu0 %v1277, 32
    %v1280 = vpop.permute.xlu0 %1279
    %v1282 = vsel %vm169, %v1280, 0
    %1284 = vmatprep.subr.bf16.mxu0 0
    %1285 = vmatpush1.bf16.msra.mxu0 0
    %1286 = vmatprep.subr.bf16.mxu0 0
    %1287 = vmatpush1.bf16.msra.mxu0 0
    %1288 = vmatprep.subr.bf16.mxu0 0
    %1289 = vmatpush1.bf16.msra.mxu0 0
    %1290 = vmatprep.subr.bf16.mxu0 0
    %1291 = vmatpush1.bf16.msra.mxu0 0
    %1292 = vmatprep.subr.bf16.mxu0 0
    %1293 = vmatpush1.bf16.msra.mxu0 0
    %1294 = vmatprep.subr.bf16.mxu0 0
    %1295 = vmatpush1.bf16.msra.mxu0 0
    %1296 = vmatprep.subr.bf16.mxu0 0
    %1297 = vmatpush1.bf16.msra.mxu0 %v758
    %1298 = vmatprep.subr.bf16.mxu0 0
    %1299 = vmatpush1.bf16.msra.mxu0 %v757
    %1300 = vmatprep.subr.bf16.mxu0 0
    %1301 = vmatpush2.bf16.msra.mxu0 0
    %1302 = vmatprep.subr.bf16.mxu0 0
    %1303 = vmatpush2.bf16.msra.mxu0 0
    %1304 = vmatprep.subr.bf16.mxu0 0
    %1305 = vmatpush2.bf16.msra.mxu0 0
    %1306 = vmatprep.subr.bf16.mxu0 0
    %1307 = vmatpush2.bf16.msra.mxu0 0
    %1308 = vmatprep.subr.bf16.mxu0 0
    %1309 = vmatpush2.bf16.msra.mxu0 0
    %1310 = vmatprep.subr.bf16.mxu0 0
    %1311 = vmatpush2.bf16.msra.mxu0 0
    %1312 = vmatprep.subr.bf16.mxu0 0
    %1313 = vmatpush2.bf16.msra.mxu0 0
    %1314 = vmatprep.subr.bf16.mxu0 0
    %1315 = vmatpush2.bf16.msra.mxu0 0
    %1316 = vmatprep.mubr.bf16.mxu0 0
    %1317 = vmatmul.mubr.bf16.gmra.mxu0 %v1282
    %v1318 = vpop.f32.mrf.mxu0
    %v1319 = vadd.f32 0.0, %v1318
    %v1320 = vpop.f32.mrf.mxu0
    %v1321 = vpop.f32.mrf.mxu0
    %v1322 = vpop.f32.mrf.mxu0
    %1323 = vdwg.mxu0
    %v1324 = vadd.f32 %v846, %v1319
    %v1325 = vxor.u32 %v1324, 2147483648
    %v1326 = vmul.f32 %v1325, 1.442695
    %v1327 = vpow.pop %v1326
    %v1328 = vadd.f32 %v1327, 1.0
    %v1329 = vrcp.pop %v1328
    %v1330 = vmul.f32 1.0, %v1329
    %v1331 = vtanh.pop %v1324
    %v1332 = vmul.f32 %v1330, %v1270
    %1334 = vrot.lane.b32.xlu0 %v1331, 64
    %v1335 = vpop.permute.xlu0 %1334
    %v1337 = vmul.f32 %v1330, %v1335
    %1339 = vrot.lane.b32.xlu0 %v1337, 32
    %v1340 = vpop.permute.xlu0 %1339
    %v1342 = vadd.f32 %v1332, %v1340
    %v1343 = vtanh.pop %v1342
    %1345 = vrot.lane.b32.xlu0 %v1343, 64
    %v1346 = vpop.permute.xlu0 %1345
    %v1348 = vmul.f32 %v1330, %v1346
    %v1349 = vpack.c.bf16 %v1348, %v1348
    %1351 = vrot.lane.b32.xlu0 %v1349, 32
    %v1352 = vpop.permute.xlu0 %1351
    %v1354 = vsel %vm169, %v1352, 0
    %1356 = vmatprep.subr.bf16.mxu0 0
    %1357 = vmatpush1.bf16.msra.mxu0 0
    %1358 = vmatprep.subr.bf16.mxu0 0
    %1359 = vmatpush1.bf16.msra.mxu0 0
    %1360 = vmatprep.subr.bf16.mxu0 0
    %1361 = vmatpush1.bf16.msra.mxu0 0
    %1362 = vmatprep.subr.bf16.mxu0 0
    %1363 = vmatpush1.bf16.msra.mxu0 0
    %1364 = vmatprep.subr.bf16.mxu0 0
    %1365 = vmatpush1.bf16.msra.mxu0 0
    %1366 = vmatprep.subr.bf16.mxu0 0
    %1367 = vmatpush1.bf16.msra.mxu0 0
    %1368 = vmatprep.subr.bf16.mxu0 0
    %1369 = vmatpush1.bf16.msra.mxu0 %v758
    %1370 = vmatprep.subr.bf16.mxu0 0
    %1371 = vmatpush1.bf16.msra.mxu0 %v757
    %1372 = vmatprep.subr.bf16.mxu0 0
    %1373 = vmatpush2.bf16.msra.mxu0 0
    %1374 = vmatprep.subr.bf16.mxu0 0
    %1375 = vmatpush2.bf16.msra.mxu0 0
    %1376 = vmatprep.subr.bf16.mxu0 0
    %1377 = vmatpush2.bf16.msra.mxu0 0
    %1378 = vmatprep.subr.bf16.mxu0 0
    %1379 = vmatpush2.bf16.msra.mxu0 0
    %1380 = vmatprep.subr.bf16.mxu0 0
    %1381 = vmatpush2.bf16.msra.mxu0 0
    %1382 = vmatprep.subr.bf16.mxu0 0
    %1383 = vmatpush2.bf16.msra.mxu0 0
    %1384 = vmatprep.subr.bf16.mxu0 0
    %1385 = vmatpush2.bf16.msra.mxu0 0
    %1386 = vmatprep.subr.bf16.mxu0 0
    %1387 = vmatpush2.bf16.msra.mxu0 0
    %1388 = vmatprep.mubr.bf16.mxu0 0
    %1389 = vmatmul.mubr.bf16.gmra.mxu0 %v1354
    %v1390 = vpop.f32.mrf.mxu0
    %v1391 = vadd.f32 0.0, %v1390
    %v1392 = vpop.f32.mrf.mxu0
    %v1393 = vpop.f32.mrf.mxu0
    %v1394 = vpop.f32.mrf.mxu0
    %1395 = vdwg.mxu0
    %v1396 = vadd.f32 %v849, %v1391
    %v1397 = vxor.u32 %v1396, 2147483648
    %v1398 = vmul.f32 %v1397, 1.442695
    %v1399 = vpow.pop %v1398
    %v1400 = vadd.f32 %v1399, 1.0
    %v1401 = vrcp.pop %v1400
    %v1402 = vmul.f32 1.0, %v1401
    %v1403 = vtanh.pop %v1396
    %v1404 = vmul.f32 %v1402, %v1342
    %1406 = vrot.lane.b32.xlu0 %v1403, 64
    %v1407 = vpop.permute.xlu0 %1406
    %v1409 = vmul.f32 %v1402, %v1407
    %1411 = vrot.lane.b32.xlu0 %v1409, 32
    %v1412 = vpop.permute.xlu0 %1411
    %v1414 = vadd.f32 %v1404, %v1412
    %v1415 = vtanh.pop %v1414
    %1417 = vrot.lane.b32.xlu0 %v1415, 64
    %v1418 = vpop.permute.xlu0 %1417
    %v1420 = vmul.f32 %v1402, %v1418
    %v1421 = vld [vmem:[#allocation4] sm:$0xff]
    %v1422 = vld [vmem:[#allocation4 + $0x8] sm:$0xff]
    %v1423 = vld [vmem:[#allocation4 + $0x10] sm:$0xff]
    %v1424 = vld [vmem:[#allocation4 + $0x18] sm:$0xff]
    %v1425 = vld [vmem:[#allocation4 + $0x20] sm:$0x7]
    %v1426 = vlaneseq
    %v1427 = vshrl.u32 %v1426, 7
    %v1428 = vsub.s32 0, %v1427
    %v1429 = vrot.slane %v1425, %v1428
    %1431 = vrot.lane.b32.xlu0 %v1420, 32
    %v1432 = vpop.permute.xlu0 %1431
    %v1433 = vsel %vm169, %v1432, 0
    %1435 = vmatprep.subr.mxu0 0.0
    %1436 = vmatpush1.msra.mxu0 0.0
    %1437 = vmatprep.subr.mxu0 0.0
    %1438 = vmatpush1.msra.mxu0 0.0
    %1439 = vmatprep.subr.mxu0 0.0
    %1440 = vmatpush1.msra.mxu0 0.0
    %1441 = vmatprep.subr.mxu0 0.0
    %1442 = vmatpush1.msra.mxu0 0.0
    %1443 = vmatprep.subr.mxu0 0.0
    %1444 = vmatpush1.msra.mxu0 0.0
    %1445 = vmatprep.subr.mxu0 0.0
    %1446 = vmatpush1.msra.mxu0 0.0
    %1447 = vmatprep.subr.mxu0 0.0
    %1448 = vmatpush1.msra.mxu0 0.0
    %1449 = vmatprep.subr.mxu0 0.0
    %1450 = vmatpush1.msra.mxu0 0.0
    %1451 = vmatprep.subr.mxu0 0.0
    %1452 = vmatpush1.msra.mxu0 0.0
    %1453 = vmatprep.subr.mxu0 0.0
    %1454 = vmatpush1.msra.mxu0 0.0
    %1455 = vmatprep.subr.mxu0 0.0
    %1456 = vmatpush1.msra.mxu0 0.0
    %1457 = vmatprep.subr.mxu0 0.0
    %1458 = vmatpush1.msra.mxu0 0.0
    %1459 = vmatprep.subr.mxu0 0.0
    %1460 = vmatpush1.msra.mxu0 %v1424
    %1461 = vmatprep.subr.mxu0 0.0
    %1462 = vmatpush1.msra.mxu0 %v1423
    %1463 = vmatprep.subr.mxu0 0.0
    %1464 = vmatpush1.msra.mxu0 %v1422
    %1465 = vmatprep.subr.mxu0 0.0
    %1466 = vmatpush1.msra.mxu0 %v1421
    %1467 = vmatprep.subr.mxu0 0.0
    %1468 = vmatpush2.msra.mxu0 0.0
    %1469 = vmatprep.subr.mxu0 0.0
    %1470 = vmatpush2.msra.mxu0 0.0
    %1471 = vmatprep.subr.mxu0 0.0
    %1472 = vmatpush2.msra.mxu0 0.0
    %1473 = vmatprep.subr.mxu0 0.0
    %1474 = vmatpush2.msra.mxu0 0.0
    %1475 = vmatprep.subr.mxu0 0.0
    %1476 = vmatpush2.msra.mxu0 0.0
    %1477 = vmatprep.subr.mxu0 0.0
    %1478 = vmatpush2.msra.mxu0 0.0
    %1479 = vmatprep.subr.mxu0 0.0
    %1480 = vmatpush2.msra.mxu0 0.0
    %1481 = vmatprep.subr.mxu0 0.0
    %1482 = vmatpush2.msra.mxu0 0.0
    %1483 = vmatprep.subr.mxu0 0.0
    %1484 = vmatpush2.msra.mxu0 0.0
    %1485 = vmatprep.subr.mxu0 0.0
    %1486 = vmatpush2.msra.mxu0 0.0
    %1487 = vmatprep.subr.mxu0 0.0
    %1488 = vmatpush2.msra.mxu0 0.0
    %1489 = vmatprep.subr.mxu0 0.0
    %1490 = vmatpush2.msra.mxu0 0.0
    %1491 = vmatprep.subr.mxu0 0.0
    %1492 = vmatpush2.msra.mxu0 0.0
    %1493 = vmatprep.subr.mxu0 0.0
    %1494 = vmatpush2.msra.mxu0 0.0
    %1495 = vmatprep.subr.mxu0 0.0
    %1496 = vmatpush2.msra.mxu0 0.0
    %1497 = vmatprep.subr.mxu0 0.0
    %1498 = vmatpush2.msra.mxu0 0.0
    %1499 = vmatprep.mubr.f32.mxu0 0.0
    %1500 = vmatmul.mubr.f32.gmra.mxu0 %v1433
    %v1501 = vpop.f32.mrf.mxu0
    %v1502 = vadd.f32 %v1429, %v1501
    %v1503 = vpop.f32.mrf.mxu0
    %1504 = vdwg.mxu0
    %v1505 = vmax.f32 %v1502, 0.0
    %v1506 = vlaneseq
    %v1507 = vshrl.u32 %v1506, 7
    %v1508 = vsub.s32 1, %v1507
    %v1509 = vrot.slane %v1425, %v1508
    %v1510 = vmul.f32 %v1505, %v1509
    %1511 = vadd.xlane.f32.xlu0 %v1510
    %v1512 = vpop.xlane.xlu0 %1511
    %v1513 = vlaneseq
    %v1514 = vshrl.u32 %v1513, 7
    %v1515 = vsub.s32 2, %v1514
    %v1516 = vrot.slane %v1425, %v1515
    %v1517 = vadd.f32 %v1512, %v1516
    %vm1518 = vcmask 1024
    %1519 = vst.msk [vmem:[%s4] sm:$0x3] %vm1518, %v1517
    // Predicated region
    $region26: #{bitcoin_lstm_forward.1} parent=1 // pred_check
      _
    $region27: #{bitcoin_lstm_forward.1} parent=1 // pred_check_branch
      %1521 = sbr.rel (0) target = $region29
    $region28: #{bitcoin_lstm_forward.1} parent=1 // pred_region
      _
    $region29: #{bitcoin_lstm_forward.1} parent=1 // pred_fallthru
      _
    // Predicated region
    $region30: #{bitcoin_lstm_forward.1} parent=1 // pred_check
      _
    $region31: #{bitcoin_lstm_forward.1} parent=1 // pred_check_branch
      %1523 = sbr.rel (0) target = $region33
    $region32: #{bitcoin_lstm_forward.1} parent=1 // pred_region
      _
    $region33: #{bitcoin_lstm_forward.1} parent=1 // pred_fallthru
      _
    %1524 = vsyncpa [#allocation3], 1
    %1525 = vsyncpa [#allocation5], 1

</llo_original>
